<compile_context>
chip_gen: v7x
topology: tpu7x:2x2x1
jax: 0.10.0
libtpu: 0.0.40
codegen_flags: <defaults>
</compile_context>

<pallas_src>
import math

import jax
import jax.numpy as jnp
from jax.experimental import pallas as pl
from jax.experimental.pallas import tpu as pltpu


# ---------------- config (consistent with the T5Config fields used) ----------
BATCH = 2
SEQ = 8
D_MODEL = 32
N_HEADS = 4
D_KV = 8                      # key_value_proj_dim
INNER_DIM = N_HEADS * D_KV    # 32
NUM_BUCKETS = 32              # relative_attention_num_buckets
MAX_DISTANCE = 128            # relative_attention_max_distance
IS_DECODER = False
DROPOUT_RATE = 0.1            # eval mode -> dropout is a no-op

N_TOKENS = BATCH * SEQ        # 16 flattened (batch*seq) rows
OUT_LANES = 128               # lane-dense output width (>= D_MODEL)
NEG_INF = -1e30               # cross-batch mask value

# Set to jnp.bfloat16 on v6e / v7x to halve HBM->VMEM bytes and feed the bf16
# MXU at native rate; accumulation + softmax remain fp32 (v5e: keep fp32).
MATMUL_DTYPE = jnp.float32


# ---------------- relative position bias (glue, matches compute_bias) --------
def _relative_position_bucket(relative_position, bidirectional, num_buckets,
                              max_distance):
    relative_buckets = jnp.zeros_like(relative_position)
    if bidirectional:
        num_buckets //= 2
        relative_buckets = relative_buckets + (
            (relative_position > 0).astype(jnp.int32) * num_buckets)
        relative_position = jnp.abs(relative_position)
    else:
        relative_position = -jnp.minimum(relative_position,
                                         jnp.zeros_like(relative_position))
    max_exact = num_buckets // 2
    is_small = relative_position < max_exact
    # clamp away from 0 so log() never produces -inf (value is discarded by
    # the is_small where(), but int-cast of -inf is implementation-defined).
    rel_pos_f = jnp.maximum(relative_position.astype(jnp.float32), 1.0)
    rel_if_large = max_exact + (
        jnp.log(rel_pos_f / max_exact)
        / math.log(max_distance / max_exact)
        * (num_buckets - max_exact)).astype(jnp.int32)
    rel_if_large = jnp.minimum(rel_if_large, num_buckets - 1)
    relative_buckets = relative_buckets + jnp.where(
        is_small, relative_position, rel_if_large)
    return relative_buckets


def compute_bias(rel_emb, query_length, key_length):
    """rel_emb: [NUM_BUCKETS, N_HEADS] -> bias [1, N_HEADS, q_len, k_len]."""
    context_position = jnp.arange(query_length, dtype=jnp.int32)[:, None]
    memory_position = jnp.arange(key_length, dtype=jnp.int32)[None, :]
    relative_position = memory_position - context_position
    buckets = _relative_position_bucket(
        relative_position,
        bidirectional=not IS_DECODER,
        num_buckets=NUM_BUCKETS,
        max_distance=MAX_DISTANCE,
    )
    values = rel_emb[buckets]                        # [q, k, H]
    values = jnp.transpose(values, (2, 0, 1))[None]  # [1, H, q, k]
    return values


# ---------------- Pallas kernel: the whole attention block in one step -------
def t5_attention_kernel(h_ref, wqkv_ref, woh_ref, bias_ref, out_ref):
    # h_ref:    (N_TOKENS, D_MODEL)            flattened hidden states
    # wqkv_ref: (D_MODEL, 3*INNER_DIM)         fused [Wq^T | Wk^T | Wv^T]
    # woh_ref:  (N_HEADS, D_KV, OUT_LANES)     Wo^T split per head, lane-padded
    # bias_ref: (N_HEADS, N_TOKENS, N_TOKENS)  block-diag bias + -1e30 mask
    # out_ref:  (N_TOKENS, OUT_LANES)          lane-dense output

    # Fused Q/K/V projection: one MXU op, 96/128 lane fill, fp32 accumulate.
    qkv = jnp.dot(h_ref[...], wqkv_ref[...],
                  preferred_element_type=jnp.float32)          # (N, 3*INNER)
    qkv = qkv.astype(h_ref.dtype)

    # Heads: lane axis -> leading batch axis using layout-friendly ops only
    # (one 2-D transpose, a sublane-group reshape, leading slices, swapaxes).
    qkv_t = qkv.T                                              # (3*INNER, N)
    g = qkv_t.reshape(3 * N_HEADS, D_KV, N_TOKENS)             # (3H, Dk, N)
    q_hnd = jnp.swapaxes(g[0 * N_HEADS:1 * N_HEADS], 1, 2)     # (H, N, Dk)
    k_hdn = g[1 * N_HEADS:2 * N_HEADS]                         # (H, Dk, N)
    v_hdn = g[2 * N_HEADS:3 * N_HEADS]                         # (H, Dk, N)

    # Scores over the flattened token axis; cross-batch pairs are masked to
    # -1e30 via bias_ref.  T5 uses no 1/sqrt(d) scaling.
    scores = jnp.einsum("hnd,hdm->hnm", q_hnd, k_hdn,
                        preferred_element_type=jnp.float32)    # (H, N, N)
    scores = scores + bias_ref[...]

    # Softmax in fp32 (matches softmax(scores.float())); dropout = identity
    # in eval mode.  Reciprocal goes to the otherwise-idle EUP slot.
    m = jnp.max(scores, axis=-1, keepdims=True)
    e = jnp.exp(scores - m)
    attn = e * pl.reciprocal(jnp.sum(e, axis=-1, keepdims=True), approx=True)

    # Context and head-batched output projection (summed over heads).  The
    # lane-padded Wo makes the final store a full-tile, unmasked store.
    ctx = jnp.einsum("hnm,hdm->hnd", attn.astype(v_hdn.dtype), v_hdn,
                     preferred_element_type=jnp.float32)       # (H, N, Dk)
    partial = jnp.einsum("hnd,hde->hne", ctx.astype(woh_ref.dtype),
                         woh_ref[...],
                         preferred_element_type=jnp.float32)   # (H, N, 128)
    out_ref[...] = jnp.sum(partial, axis=0).astype(out_ref.dtype)


def t5_attention_ccm_forward(hidden_states, wq, wk, wv, wo, rel_emb):
    """hidden_states: [B, S, D_MODEL]; weights in PyTorch (out, in) layout.

    Returns (attn_output, present_key_value_state, position_bias) as in the
    module (use_cache=False -> present is None).
    """
    B, S, D = hidden_states.shape
    assert (B, S, D) == (BATCH, SEQ, D_MODEL)

    # position bias returned by the module (and folded into the kernel input).
    position_bias = compute_bias(rel_emb, S, S).astype(jnp.float32)  # (1,H,S,S)

    # ---- wrapper-side layout plumbing (free, one-time) ----------------------
    h2d = hidden_states.reshape(N_TOKENS, D_MODEL).astype(MATMUL_DTYPE)

    # fused [Wq^T | Wk^T | Wv^T]   (PyTorch weights are (out, in)).
    wqkv_t = jnp.concatenate([wq, wk, wv], axis=0).T.astype(MATMUL_DTYPE)

    # Wo^T split per head, zero-padded on the lane axis to OUT_LANES.
    wo_heads = wo.T.reshape(N_HEADS, D_KV, D_MODEL)
    woh_pad = jnp.zeros((N_HEADS, D_KV, OUT_LANES), jnp.float32)
    woh_pad = woh_pad.at[:, :, :D_MODEL].set(wo_heads).astype(MATMUL_DTYPE)

    # Block-diagonal bias + cross-batch mask over the flattened token axis.
    bias_mask = jnp.full((N_HEADS, N_TOKENS, N_TOKENS), NEG_INF, jnp.float32)
    for b in range(BATCH):
        sl = slice(b * SEQ, (b + 1) * SEQ)
        bias_mask = bias_mask.at[:, sl, sl].set(position_bias[0])

    out_padded = pl.pallas_call(
        t5_attention_kernel,
        out_shape=jax.ShapeDtypeStruct((N_TOKENS, OUT_LANES), jnp.float32),
        in_specs=[
            pl.BlockSpec(memory_space=pltpu.MemorySpace.VMEM),
            pl.BlockSpec(memory_space=pltpu.MemorySpace.VMEM),
            pl.BlockSpec(memory_space=pltpu.MemorySpace.VMEM),
            pl.BlockSpec(memory_space=pltpu.MemorySpace.VMEM),
        ],
        out_specs=pl.BlockSpec(memory_space=pltpu.MemorySpace.VMEM),
    )(h2d, wqkv_t, woh_pad, bias_mask)

    attn_output = out_padded[:, :D_MODEL].reshape(B, S, D_MODEL)
    present_key_value_state = None  # use_cache=False
    # TODO(synk): attention mask, layer_head_mask, dropout(training=True),
    # cross-attention / past_key_value cache and the sum_attn_mask compression
    # path are not exercised (forward defaults take the self-attn eval path).
    return attn_output, present_key_value_state, position_bias


# ---------------- pure-JAX reference (sanity check) ---------------------------
def reference_forward(hidden_states, wq, wk, wv, wo, rel_emb):
    B, S, D = hidden_states.shape
    h = hidden_states.astype(jnp.float32)
    q = h @ wq.T
    k = h @ wk.T
    v = h @ wv.T

    def shape(x):
        return jnp.transpose(x.reshape(B, S, N_HEADS, D_KV), (0, 2, 1, 3))

    qh, kh, vh = shape(q), shape(k), shape(v)
    scores = jnp.einsum("bhqd,bhkd->bhqk", qh, kh)
    scores = scores + compute_bias(rel_emb, S, S)
    attn = jax.nn.softmax(scores, axis=-1)
    ctx = jnp.einsum("bhqk,bhkd->bhqd", attn, vh)
    ctx = jnp.transpose(ctx, (0, 2, 1, 3)).reshape(B, S, INNER_DIM)
    return ctx @ wo.T


if __name__ == "__main__":
    key = jax.random.PRNGKey(0)
    k1, k2, k3, k4, k5, k6 = jax.random.split(key, 6)

    # Deterministic parameter init (PyTorch nn.Linear layout: (out, in)).
    wq = jax.random.normal(k1, (INNER_DIM, D_MODEL), jnp.float32) * 0.05
    wk = jax.random.normal(k2, (INNER_DIM, D_MODEL), jnp.float32) * 0.05
    wv = jax.random.normal(k3, (INNER_DIM, D_MODEL), jnp.float32) * 0.05
    wo = jax.random.normal(k4, (D_MODEL, INNER_DIM), jnp.float32) * 0.05
    rel_emb = jax.random.normal(k5, (NUM_BUCKETS, N_HEADS), jnp.float32) * 0.1

    hidden_states = jax.random.normal(k6, (BATCH, SEQ, D_MODEL), jnp.float32)

    attn_out, present, pos_bias = t5_attention_ccm_forward(
        hidden_states, wq, wk, wv, wo, rel_emb)
    attn_out = jax.block_until_ready(attn_out)

    ref = reference_forward(hidden_states, wq, wk, wv, wo, rel_emb)
    assert attn_out.shape == (BATCH, SEQ, D_MODEL)
    assert pos_bias.shape == (1, N_HEADS, SEQ, SEQ)
    tol = 5e-3 if MATMUL_DTYPE == jnp.float32 else 3e-2
    max_err = float(jnp.max(jnp.abs(attn_out - ref)))
    assert jnp.allclose(attn_out, ref, atol=tol, rtol=tol), max_err

    print("KERNEL_OK")
</pallas_src>

<mosaic_0001>
module attributes {stable_mosaic.version = 11 : i64} {
  func.func @t5_attention_kernel(%arg0: memref<16x32xf32, #tpu.memory_space<vmem>>, %arg1: memref<32x96xf32, #tpu.memory_space<vmem>>, %arg2: memref<4x8x128xf32, #tpu.memory_space<vmem>>, %arg3: memref<4x16x16xf32, #tpu.memory_space<vmem>>, %arg4: memref<16x128xf32, #tpu.memory_space<vmem>>) attributes {dimension_semantics = [], scalar_prefetch = 0 : i64, scratch_operands = 0 : i64, tpu.core_type = #tpu.core_type<tc>} {
    %c0 = arith.constant 0 : index
    %c0_0 = arith.constant 0 : index
    %0 = vector.load %arg0[%c0, %c0_0] : memref<16x32xf32, #tpu.memory_space<vmem>>, vector<16x32xf32>
    %c0_1 = arith.constant 0 : index
    %c0_2 = arith.constant 0 : index
    %1 = vector.load %arg1[%c0_1, %c0_2] : memref<32x96xf32, #tpu.memory_space<vmem>>, vector<32x96xf32>
    %cst = arith.constant dense<0.000000e+00> : vector<16x96xf32>
    %2 = tpu.matmul %0, %1, %cst {dimension_numbers = #tpu.dot_dimension_numbers<[1], [0], [0], [1], [0, 0, 1, 1], [], []>} : vector<16x32xf32>, vector<32x96xf32>, vector<16x96xf32> -> vector<16x96xf32>
    %3 = tpu.transpose %2, [1, 0] : vector<16x96xf32> -> vector<96x16xf32>
    %4 = vector.shape_cast %3 : vector<96x16xf32> to vector<12x8x16xf32>
    %5 = vector.extract_strided_slice %4 {offsets = [0, 0, 0], sizes = [4, 8, 16], strides = [1, 1, 1]} : vector<12x8x16xf32> to vector<4x8x16xf32>
    %6 = tpu.transpose %5, [0, 2, 1] : vector<4x8x16xf32> -> vector<4x16x8xf32>
    %7 = vector.extract_strided_slice %4 {offsets = [4, 0, 0], sizes = [4, 8, 16], strides = [1, 1, 1]} : vector<12x8x16xf32> to vector<4x8x16xf32>
    %8 = vector.extract_strided_slice %4 {offsets = [8, 0, 0], sizes = [4, 8, 16], strides = [1, 1, 1]} : vector<12x8x16xf32> to vector<4x8x16xf32>
    "tpu.trace_start"() <{level = 10 : i32, message = "hnd,hdm->hnm"}> : () -> ()
    %cst_3 = arith.constant dense<0.000000e+00> : vector<4x16x16xf32>
    %9 = tpu.matmul %6, %7, %cst_3 {dimension_numbers = #tpu.dot_dimension_numbers<[2], [1], [1], [2], [0, 0, 0, 1, 1, 2], [0], [0]>} : vector<4x16x8xf32>, vector<4x8x16xf32>, vector<4x16x16xf32> -> vector<4x16x16xf32>
    "tpu.trace_stop"() : () -> ()
    %c0_4 = arith.constant 0 : index
    %c0_5 = arith.constant 0 : index
    %c0_6 = arith.constant 0 : index
    %10 = vector.load %arg3[%c0_4, %c0_5, %c0_6] : memref<4x16x16xf32, #tpu.memory_space<vmem>>, vector<4x16x16xf32>
    %11 = arith.addf %9, %10 : vector<4x16x16xf32>
    %cst_7 = arith.constant dense<0xFF800000> : vector<4x16xf32>
    %12 = vector.multi_reduction <maximumf>, %11, %cst_7 [2] : vector<4x16x16xf32> to vector<4x16xf32>
    %13 = vector.shape_cast %12 : vector<4x16xf32> to vector<4x16x1xf32>
    %14 = vector.broadcast %13 : vector<4x16x1xf32> to vector<4x16x16xf32>
    %15 = arith.subf %11, %14 : vector<4x16x16xf32>
    %16 = math.exp %15 : vector<4x16x16xf32>
    %cst_8 = arith.constant dense<0.000000e+00> : vector<4x16xf32>
    %17 = vector.multi_reduction <add>, %16, %cst_8 [2] : vector<4x16x16xf32> to vector<4x16xf32>
    %18 = vector.shape_cast %17 : vector<4x16xf32> to vector<4x16x1xf32>
    %19 = tpu.reciprocal %18 {approx = true} : vector<4x16x1xf32> -> vector<4x16x1xf32>
    %20 = vector.broadcast %19 : vector<4x16x1xf32> to vector<4x16x16xf32>
    %21 = arith.mulf %16, %20 : vector<4x16x16xf32>
    "tpu.trace_start"() <{level = 10 : i32, message = "hnm,hdm->hnd"}> : () -> ()
    %cst_9 = arith.constant dense<0.000000e+00> : vector<4x16x8xf32>
    %22 = tpu.matmul %21, %8, %cst_9 {dimension_numbers = #tpu.dot_dimension_numbers<[2], [2], [1], [1], [0, 0, 0, 1, 1, 1], [0], [0]>} : vector<4x16x16xf32>, vector<4x8x16xf32>, vector<4x16x8xf32> -> vector<4x16x8xf32>
    "tpu.trace_stop"() : () -> ()
    %c0_10 = arith.constant 0 : index
    %c0_11 = arith.constant 0 : index
    %c0_12 = arith.constant 0 : index
    %23 = vector.load %arg2[%c0_10, %c0_11, %c0_12] : memref<4x8x128xf32, #tpu.memory_space<vmem>>, vector<4x8x128xf32>
    "tpu.trace_start"() <{level = 10 : i32, message = "hnd,hde->hne"}> : () -> ()
    %cst_13 = arith.constant dense<0.000000e+00> : vector<4x16x128xf32>
    %24 = tpu.matmul %22, %23, %cst_13 {dimension_numbers = #tpu.dot_dimension_numbers<[2], [1], [1], [2], [0, 0, 0, 1, 1, 2], [0], [0]>} : vector<4x16x8xf32>, vector<4x8x128xf32>, vector<4x16x128xf32> -> vector<4x16x128xf32>
    "tpu.trace_stop"() : () -> ()
    %cst_14 = arith.constant dense<0.000000e+00> : vector<16x128xf32>
    %25 = vector.multi_reduction <add>, %24, %cst_14 [0] : vector<4x16x128xf32> to vector<16x128xf32>
    %c0_15 = arith.constant 0 : index
    %c0_16 = arith.constant 0 : index
    %26 = vector.load %arg4[%c0_15, %c0_16] : memref<16x128xf32, #tpu.memory_space<vmem>>, vector<16x128xf32>
    tpu.vector_store %arg4[%c0_15, %c0_16], %25 {strides = array<i32>} : memref<16x128xf32, #tpu.memory_space<vmem>>, vector<16x128xf32>,
    return
  }
}

</mosaic_0001>

<llo_original>
// kernel: tpu_custom_call.1
$region0: #{tpu_custom_call.1}
  #allocation0 [shape = 'u32[]', space=smem, size = 0x4, offset = 0x4, fixed_abs, tag = 'smem constant byte address 0x4 - core index']
  #allocation1 [shape = 'u32[144,128]{1,0:T(1,128)}', space=vmem, size = 0x12000, scoped, tag = 'internal scratch']
  %s0 = inlined_call_operand.hbm [shape: f32[16,32], index: 0, kind: input, shape index: {}]
  %s1 = inlined_call_operand.hbm [shape: f32[32,96], index: 1, kind: input, shape index: {}]
  %s2 = inlined_call_operand.hbm [shape: f32[4,8,128], index: 2, kind: input, shape index: {}]
  %s3 = inlined_call_operand.hbm [shape: f32[4,16,16], index: 3, kind: input, shape index: {}]
  %s4 = inlined_call_operand.hbm [shape: f32[16,128], index: 4, kind: output, shape index: {}]
  %s5 = sld [smem:[#allocation0]]
  $region42: #{tpu_custom_call.1} parent=0
    _
  %s7 = ssub.s32 1, %s5
  %s8 = scalar_select 0, %s7, %s5
  $region1: #{tpu_custom_call.1} parent=0
    #allocation2 [shape = 'u8[8192]{0}', space=vmem, size = 0x2000, scoped, tag = 'input window, operand 0, single buffered']
    #allocation3 [shape = 's32[1]{0}', space=sflag, size = 0x4, scoped, tag = 'scoped memory for tpu_custom_call.1']
    #allocation4 [shape = 's32[1]{0}', space=sflag, size = 0x4, scoped, tag = 'scoped memory for tpu_custom_call.1']
    #allocation5 [shape = 'u8[16384]{0}', space=vmem, size = 0x4000, scoped, tag = 'input window, operand 1, single buffered']
    #allocation6 [shape = 's32[1]{0}', space=sflag, size = 0x4, scoped, tag = 'scoped memory for tpu_custom_call.1']
    #allocation7 [shape = 'u8[16384]{0}', space=vmem, size = 0x4000, scoped, tag = 'input window, operand 2, single buffered']
    #allocation8 [shape = 'u8[32768]{0}', space=vmem, size = 0x8000, scoped, tag = 'input window, operand 3, single buffered']
    #allocation9 [shape = 's32[1]{0}', space=sflag, size = 0x4, scoped, tag = 'scoped memory for tpu_custom_call.1']
    #allocation10 [shape = 'u8[8192]{0}', space=vmem, size = 0x2000, scoped, tag = 'output window, operand 0, single buffered']
    %9 = vsyncpa [#allocation3], 0
    %10 = vsyncpa [#allocation6], 0
    %11 = vsyncpa [#allocation9], 0
    %12 = vsyncpa [#allocation4], 0
    // Predicated region
    $region2: #{tpu_custom_call.1} parent=1 // pred_check
      _
    $region3: #{tpu_custom_call.1} parent=1 // pred_check_branch
      %14 = sbr.rel (0) target = $region5
    $region4: #{tpu_custom_call.1} parent=1 // pred_region
      %s16 = ssub.s32 256, 256
      %17 = vsyncadd [#allocation3], %s16
      %s18 = sshll.u32 [#allocation2], 4
      %s19 = int_to_ptr.vmem [resolvable:$true] %s18
      %24 = dma.hbm_to_vmem [thread:$0]  %s0, 256, %s19, [#allocation3], 128, 128, 8
    $region5: #{tpu_custom_call.1} parent=1 // pred_fallthru
      _
    // Predicated region
    $region6: #{tpu_custom_call.1} parent=1 // pred_check
      _
    $region7: #{tpu_custom_call.1} parent=1 // pred_check_branch
      %26 = sbr.rel (0) target = $region9
    $region8: #{tpu_custom_call.1} parent=1 // pred_region
      %s28 = ssub.s32 512, 512
      %29 = vsyncadd [#allocation6], %s28
      %s30 = sshll.u32 [#allocation5], 4
      %s31 = int_to_ptr.vmem [resolvable:$true] %s30
      %36 = dma.hbm_to_vmem [thread:$0]  %s1, 512, %s31, [#allocation6], 128, 128, 8
    $region9: #{tpu_custom_call.1} parent=1 // pred_fallthru
      _
    // Predicated region
    $region10: #{tpu_custom_call.1} parent=1 // pred_check
      _
    $region11: #{tpu_custom_call.1} parent=1 // pred_check_branch
      %38 = sbr.rel (0) target = $region13
    $region12: #{tpu_custom_call.1} parent=1 // pred_region
      %s40 = ssub.s32 512, 512
      %41 = vsyncadd [#allocation6], %s40
      %s42 = sshll.u32 [#allocation7], 4
      %s43 = int_to_ptr.vmem [resolvable:$true] %s42
      %48 = dma.hbm_to_vmem [thread:$0]  %s2, 512, %s43, [#allocation6], 128, 128, 8
    $region13: #{tpu_custom_call.1} parent=1 // pred_fallthru
      _
    // Predicated region
    $region14: #{tpu_custom_call.1} parent=1 // pred_check
      _
    $region15: #{tpu_custom_call.1} parent=1 // pred_check_branch
      %50 = sbr.rel (0) target = $region17
    $region16: #{tpu_custom_call.1} parent=1 // pred_region
      %s52 = ssub.s32 1024, 1024
      %53 = vsyncadd [#allocation9], %s52
      %s54 = sshll.u32 [#allocation8], 4
      %s55 = int_to_ptr.vmem [resolvable:$true] %s54
      %60 = dma.hbm_to_vmem [thread:$0]  %s3, 1024, %s55, [#allocation9], 128, 128, 8
    $region17: #{tpu_custom_call.1} parent=1 // pred_fallthru
      _
    // Predicated region
    $region18: #{tpu_custom_call.1} parent=1 // pred_check
      _
    $region19: #{tpu_custom_call.1} parent=1 // pred_check_branch
      %62 = sbr.rel (0) target = $region21
    $region20: #{tpu_custom_call.1} parent=1 // pred_region
      %63 = dma.done [#allocation3], 256
    $region21: #{tpu_custom_call.1} parent=1 // pred_fallthru
      _
    // Predicated region
    $region22: #{tpu_custom_call.1} parent=1 // pred_check
      _
    $region23: #{tpu_custom_call.1} parent=1 // pred_check_branch
      %65 = sbr.rel (0) target = $region25
    $region24: #{tpu_custom_call.1} parent=1 // pred_region
      %66 = dma.done [#allocation6], 512
    $region25: #{tpu_custom_call.1} parent=1 // pred_fallthru
      _
    // Predicated region
    $region26: #{tpu_custom_call.1} parent=1 // pred_check
      _
    $region27: #{tpu_custom_call.1} parent=1 // pred_check_branch
      %68 = sbr.rel (0) target = $region29
    $region28: #{tpu_custom_call.1} parent=1 // pred_region
      %69 = dma.done [#allocation6], 512
    $region29: #{tpu_custom_call.1} parent=1 // pred_fallthru
      _
    // Predicated region
    $region30: #{tpu_custom_call.1} parent=1 // pred_check
      _
    $region31: #{tpu_custom_call.1} parent=1 // pred_check_branch
      %71 = sbr.rel (0) target = $region33
    $region32: #{tpu_custom_call.1} parent=1 // pred_region
      %72 = dma.done [#allocation9], 1024
    $region33: #{tpu_custom_call.1} parent=1 // pred_fallthru
      _
    %v73 = vld [vmem:[#allocation2] sm:$0xff]
    %v74 = vld [vmem:[#allocation2 + $0x8] sm:$0xff]
    %v75 = vld [vmem:[#allocation5] sm:$0xff]
    %v76 = vld [vmem:[#allocation5 + $0x8] sm:$0xff]
    %v77 = vld [vmem:[#allocation5 + $0x10] sm:$0xff]
    %v78 = vld [vmem:[#allocation5 + $0x18] sm:$0xff]
    %vm79 = vcmask 261120
    %v81 = vsel %vm79, %v73, 0
    %v84 = vsel %vm79, %v74, 0
    %86 = vmatprep.subr.mxu0 0.0
    %87 = vmatpush1.msra.mxu0 %v75
    %88 = vmatprep.subr.mxu0 0.0
    %89 = vmatpush1.msra.mxu0 %v76
    %90 = vmatprep.subr.mxu0 0.0
    %91 = vmatpush1.msra.mxu0 %v77
    %92 = vmatprep.subr.mxu0 0.0
    %93 = vmatpush1.msra.mxu0 %v78
    %94 = vmatprep.subr.mxu0 0.0
    %95 = vmatpush1.msra.mxu0 0.0
    %96 = vmatprep.subr.mxu0 0.0
    %97 = vmatpush1.msra.mxu0 0.0
    %98 = vmatprep.subr.mxu0 0.0
    %99 = vmatpush1.msra.mxu0 0.0
    %100 = vmatprep.subr.mxu0 0.0
    %101 = vmatpush1.msra.mxu0 0.0
    %102 = vmatprep.subr.mxu0 0.0
    %103 = vmatpush1.msra.mxu0 0.0
    %104 = vmatprep.subr.mxu0 0.0
    %105 = vmatpush1.msra.mxu0 0.0
    %106 = vmatprep.subr.mxu0 0.0
    %107 = vmatpush1.msra.mxu0 0.0
    %108 = vmatprep.subr.mxu0 0.0
    %109 = vmatpush1.msra.mxu0 0.0
    %110 = vmatprep.subr.mxu0 0.0
    %111 = vmatpush1.msra.mxu0 0.0
    %112 = vmatprep.subr.mxu0 0.0
    %113 = vmatpush1.msra.mxu0 0.0
    %114 = vmatprep.subr.mxu0 0.0
    %115 = vmatpush1.msra.mxu0 0.0
    %116 = vmatprep.subr.mxu0 0.0
    %117 = vmatpush1.msra.mxu0 0.0
    %118 = vmatprep.subr.mxu0 0.0
    %119 = vmatpush1.msra.mxu0 0.0
    %120 = vmatprep.subr.mxu0 0.0
    %121 = vmatpush1.msra.mxu0 0.0
    %122 = vmatprep.subr.mxu0 0.0
    %123 = vmatpush1.msra.mxu0 0.0
    %124 = vmatprep.subr.mxu0 0.0
    %125 = vmatpush1.msra.mxu0 0.0
    %126 = vmatprep.subr.mxu0 0.0
    %127 = vmatpush1.msra.mxu0 0.0
    %128 = vmatprep.subr.mxu0 0.0
    %129 = vmatpush1.msra.mxu0 0.0
    %130 = vmatprep.subr.mxu0 0.0
    %131 = vmatpush1.msra.mxu0 0.0
    %132 = vmatprep.subr.mxu0 0.0
    %133 = vmatpush1.msra.mxu0 0.0
    %134 = vmatprep.subr.mxu0 0.0
    %135 = vmatpush1.msra.mxu0 0.0
    %136 = vmatprep.subr.mxu0 0.0
    %137 = vmatpush1.msra.mxu0 0.0
    %138 = vmatprep.subr.mxu0 0.0
    %139 = vmatpush1.msra.mxu0 0.0
    %140 = vmatprep.subr.mxu0 0.0
    %141 = vmatpush1.msra.mxu0 0.0
    %142 = vmatprep.subr.mxu0 0.0
    %143 = vmatpush1.msra.mxu0 0.0
    %144 = vmatprep.subr.mxu0 0.0
    %145 = vmatpush1.msra.mxu0 0.0
    %146 = vmatprep.subr.mxu0 0.0
    %147 = vmatpush1.msra.mxu0 0.0
    %148 = vmatprep.subr.mxu0 0.0
    %149 = vmatpush1.msra.mxu0 0.0
    %150 = vmatprep.mubr.f32.mxu0 0.0
    %151 = vmatmul.mubr.f32.gmra.mrb[0].mxu0 %v81
    %v152 = vpop.f32.mrb[0].mxu0
    %v153 = vadd.f32 0.0, %v152
    %v154 = vpop.f32.mrb[0].mxu0
    %155 = vmatprep.mubr.f32.mxu0 0.0
    %156 = vmatmul.mubr.f32.gmra.mrb[0].mxu0 %v84
    %v157 = vpop.f32.mrb[0].mxu0
    %v158 = vadd.f32 0.0, %v157
    %v159 = vpop.f32.mrb[0].mxu0
    %160 = vdwg.mxu0
    %161 = vxpose.xlu0.b32.start [1/16] %v153, 128
    %162 = vxpose.xlu0.b32.cont [2/16] %v158, 128
    %163 = vxpose.xlu0.b32.cont [3/16] 0.0, 128
    %164 = vxpose.xlu0.b32.cont [4/16] 0.0, 128
    %165 = vxpose.xlu0.b32.cont [5/16] 0.0, 128
    %166 = vxpose.xlu0.b32.cont [6/16] 0.0, 128
    %167 = vxpose.xlu0.b32.cont [7/16] 0.0, 128
    %168 = vxpose.xlu0.b32.cont [8/16] 0.0, 128
    %169 = vxpose.xlu0.b32.cont [9/16] 0.0, 128
    %170 = vxpose.xlu0.b32.cont [10/16] 0.0, 128
    %171 = vxpose.xlu0.b32.cont [11/16] 0.0, 128
    %172 = vxpose.xlu0.b32.cont [12/16] 0.0, 128
    %173 = vxpose.xlu0.b32.cont [13/16] 0.0, 128
    %174 = vxpose.xlu0.b32.cont [14/16] 0.0, 128
    %175 = vxpose.xlu0.b32.cont [15/16] 0.0, 128
    %176 = vxpose.xlu0.b32.end [16/16] 0.0, 128
    %v177 = vpop.trf.xlu0
    %v178 = vpop.trf.xlu0
    %v179 = vpop.trf.xlu0
    %v180 = vpop.trf.xlu0
    %v181 = vpop.trf.xlu0
    %v182 = vpop.trf.xlu0
    %v183 = vpop.trf.xlu0
    %v184 = vpop.trf.xlu0
    %v185 = vpop.trf.xlu0
    %v186 = vpop.trf.xlu0
    %v187 = vpop.trf.xlu0
    %v188 = vpop.trf.xlu0
    %v189 = vpop.trf.xlu0
    %v190 = vpop.trf.xlu0
    %v191 = vpop.trf.xlu0
    %v192 = vpop.trf.xlu0
    %193 = vxpose.xlu0.b32.start [1/16] %v177, 128
    %194 = vxpose.xlu0.b32.cont [2/16] 0.0, 128
    %195 = vxpose.xlu0.b32.cont [3/16] 0.0, 128
    %196 = vxpose.xlu0.b32.cont [4/16] 0.0, 128
    %197 = vxpose.xlu0.b32.cont [5/16] 0.0, 128
    %198 = vxpose.xlu0.b32.cont [6/16] 0.0, 128
    %199 = vxpose.xlu0.b32.cont [7/16] 0.0, 128
    %200 = vxpose.xlu0.b32.cont [8/16] 0.0, 128
    %201 = vxpose.xlu0.b32.cont [9/16] 0.0, 128
    %202 = vxpose.xlu0.b32.cont [10/16] 0.0, 128
    %203 = vxpose.xlu0.b32.cont [11/16] 0.0, 128
    %204 = vxpose.xlu0.b32.cont [12/16] 0.0, 128
    %205 = vxpose.xlu0.b32.cont [13/16] 0.0, 128
    %206 = vxpose.xlu0.b32.cont [14/16] 0.0, 128
    %207 = vxpose.xlu0.b32.cont [15/16] 0.0, 128
    %208 = vxpose.xlu0.b32.end [16/16] 0.0, 128
    %v209 = vpop.trf.xlu0
    %v210 = vpop.trf.xlu0
    %v211 = vpop.trf.xlu0
    %v212 = vpop.trf.xlu0
    %v213 = vpop.trf.xlu0
    %v214 = vpop.trf.xlu0
    %v215 = vpop.trf.xlu0
    %v216 = vpop.trf.xlu0
    %v217 = vpop.trf.xlu0
    %v218 = vpop.trf.xlu0
    %v219 = vpop.trf.xlu0
    %v220 = vpop.trf.xlu0
    %v221 = vpop.trf.xlu0
    %v222 = vpop.trf.xlu0
    %v223 = vpop.trf.xlu0
    %v224 = vpop.trf.xlu0
    %225 = vxpose.xlu0.b32.start [1/16] %v178, 128
    %226 = vxpose.xlu0.b32.cont [2/16] 0.0, 128
    %227 = vxpose.xlu0.b32.cont [3/16] 0.0, 128
    %228 = vxpose.xlu0.b32.cont [4/16] 0.0, 128
    %229 = vxpose.xlu0.b32.cont [5/16] 0.0, 128
    %230 = vxpose.xlu0.b32.cont [6/16] 0.0, 128
    %231 = vxpose.xlu0.b32.cont [7/16] 0.0, 128
    %232 = vxpose.xlu0.b32.cont [8/16] 0.0, 128
    %233 = vxpose.xlu0.b32.cont [9/16] 0.0, 128
    %234 = vxpose.xlu0.b32.cont [10/16] 0.0, 128
    %235 = vxpose.xlu0.b32.cont [11/16] 0.0, 128
    %236 = vxpose.xlu0.b32.cont [12/16] 0.0, 128
    %237 = vxpose.xlu0.b32.cont [13/16] 0.0, 128
    %238 = vxpose.xlu0.b32.cont [14/16] 0.0, 128
    %239 = vxpose.xlu0.b32.cont [15/16] 0.0, 128
    %240 = vxpose.xlu0.b32.end [16/16] 0.0, 128
    %v241 = vpop.trf.xlu0
    %v242 = vpop.trf.xlu0
    %v243 = vpop.trf.xlu0
    %v244 = vpop.trf.xlu0
    %v245 = vpop.trf.xlu0
    %v246 = vpop.trf.xlu0
    %v247 = vpop.trf.xlu0
    %v248 = vpop.trf.xlu0
    %v249 = vpop.trf.xlu0
    %v250 = vpop.trf.xlu0
    %v251 = vpop.trf.xlu0
    %v252 = vpop.trf.xlu0
    %v253 = vpop.trf.xlu0
    %v254 = vpop.trf.xlu0
    %v255 = vpop.trf.xlu0
    %v256 = vpop.trf.xlu0
    %257 = vxpose.xlu0.b32.start [1/16] %v179, 128
    %258 = vxpose.xlu0.b32.cont [2/16] 0.0, 128
    %259 = vxpose.xlu0.b32.cont [3/16] 0.0, 128
    %260 = vxpose.xlu0.b32.cont [4/16] 0.0, 128
    %261 = vxpose.xlu0.b32.cont [5/16] 0.0, 128
    %262 = vxpose.xlu0.b32.cont [6/16] 0.0, 128
    %263 = vxpose.xlu0.b32.cont [7/16] 0.0, 128
    %264 = vxpose.xlu0.b32.cont [8/16] 0.0, 128
    %265 = vxpose.xlu0.b32.cont [9/16] 0.0, 128
    %266 = vxpose.xlu0.b32.cont [10/16] 0.0, 128
    %267 = vxpose.xlu0.b32.cont [11/16] 0.0, 128
    %268 = vxpose.xlu0.b32.cont [12/16] 0.0, 128
    %269 = vxpose.xlu0.b32.cont [13/16] 0.0, 128
    %270 = vxpose.xlu0.b32.cont [14/16] 0.0, 128
    %271 = vxpose.xlu0.b32.cont [15/16] 0.0, 128
    %272 = vxpose.xlu0.b32.end [16/16] 0.0, 128
    %v273 = vpop.trf.xlu0
    %v274 = vpop.trf.xlu0
    %v275 = vpop.trf.xlu0
    %v276 = vpop.trf.xlu0
    %v277 = vpop.trf.xlu0
    %v278 = vpop.trf.xlu0
    %v279 = vpop.trf.xlu0
    %v280 = vpop.trf.xlu0
    %v281 = vpop.trf.xlu0
    %v282 = vpop.trf.xlu0
    %v283 = vpop.trf.xlu0
    %v284 = vpop.trf.xlu0
    %v285 = vpop.trf.xlu0
    %v286 = vpop.trf.xlu0
    %v287 = vpop.trf.xlu0
    %v288 = vpop.trf.xlu0
    %289 = vxpose.xlu0.b32.start [1/16] %v180, 128
    %290 = vxpose.xlu0.b32.cont [2/16] 0.0, 128
    %291 = vxpose.xlu0.b32.cont [3/16] 0.0, 128
    %292 = vxpose.xlu0.b32.cont [4/16] 0.0, 128
    %293 = vxpose.xlu0.b32.cont [5/16] 0.0, 128
    %294 = vxpose.xlu0.b32.cont [6/16] 0.0, 128
    %295 = vxpose.xlu0.b32.cont [7/16] 0.0, 128
    %296 = vxpose.xlu0.b32.cont [8/16] 0.0, 128
    %297 = vxpose.xlu0.b32.cont [9/16] 0.0, 128
    %298 = vxpose.xlu0.b32.cont [10/16] 0.0, 128
    %299 = vxpose.xlu0.b32.cont [11/16] 0.0, 128
    %300 = vxpose.xlu0.b32.cont [12/16] 0.0, 128
    %301 = vxpose.xlu0.b32.cont [13/16] 0.0, 128
    %302 = vxpose.xlu0.b32.cont [14/16] 0.0, 128
    %303 = vxpose.xlu0.b32.cont [15/16] 0.0, 128
    %304 = vxpose.xlu0.b32.end [16/16] 0.0, 128
    %v305 = vpop.trf.xlu0
    %v306 = vpop.trf.xlu0
    %v307 = vpop.trf.xlu0
    %v308 = vpop.trf.xlu0
    %v309 = vpop.trf.xlu0
    %v310 = vpop.trf.xlu0
    %v311 = vpop.trf.xlu0
    %v312 = vpop.trf.xlu0
    %v313 = vpop.trf.xlu0
    %v314 = vpop.trf.xlu0
    %v315 = vpop.trf.xlu0
    %v316 = vpop.trf.xlu0
    %v317 = vpop.trf.xlu0
    %v318 = vpop.trf.xlu0
    %v319 = vpop.trf.xlu0
    %v320 = vpop.trf.xlu0
    %v321 = vld [vmem:[#allocation8] sm:$0xff]
    %v322 = vld [vmem:[#allocation8 + $0x8] sm:$0xff]
    %v323 = vld [vmem:[#allocation8 + $0x10] sm:$0xff]
    %v324 = vld [vmem:[#allocation8 + $0x18] sm:$0xff]
    %v325 = vld [vmem:[#allocation8 + $0x20] sm:$0xff]
    %v326 = vld [vmem:[#allocation8 + $0x28] sm:$0xff]
    %v327 = vld [vmem:[#allocation8 + $0x30] sm:$0xff]
    %v328 = vld [vmem:[#allocation8 + $0x38] sm:$0xff]
    %vm329 = vcmask 64512
    %v331 = vsel %vm329, %v209, 0
    %v334 = vsel %vm329, %v210, 0
    %336 = vmatprep.subr.mxu0 0.0
    %337 = vmatpush1.msra.mxu0 %v181
    %338 = vmatprep.subr.mxu0 0.0
    %339 = vmatpush1.msra.mxu0 0.0
    %340 = vmatprep.subr.mxu0 0.0
    %341 = vmatpush1.msra.mxu0 0.0
    %342 = vmatprep.subr.mxu0 0.0
    %343 = vmatpush1.msra.mxu0 0.0
    %344 = vmatprep.subr.mxu0 0.0
    %345 = vmatpush1.msra.mxu0 0.0
    %346 = vmatprep.subr.mxu0 0.0
    %347 = vmatpush1.msra.mxu0 0.0
    %348 = vmatprep.subr.mxu0 0.0
    %349 = vmatpush1.msra.mxu0 0.0
    %350 = vmatprep.subr.mxu0 0.0
    %351 = vmatpush1.msra.mxu0 0.0
    %352 = vmatprep.subr.mxu0 0.0
    %353 = vmatpush1.msra.mxu0 0.0
    %354 = vmatprep.subr.mxu0 0.0
    %355 = vmatpush1.msra.mxu0 0.0
    %356 = vmatprep.subr.mxu0 0.0
    %357 = vmatpush1.msra.mxu0 0.0
    %358 = vmatprep.subr.mxu0 0.0
    %359 = vmatpush1.msra.mxu0 0.0
    %360 = vmatprep.subr.mxu0 0.0
    %361 = vmatpush1.msra.mxu0 0.0
    %362 = vmatprep.subr.mxu0 0.0
    %363 = vmatpush1.msra.mxu0 0.0
    %364 = vmatprep.subr.mxu0 0.0
    %365 = vmatpush1.msra.mxu0 0.0
    %366 = vmatprep.subr.mxu0 0.0
    %367 = vmatpush1.msra.mxu0 0.0
    %368 = vmatprep.subr.mxu0 0.0
    %369 = vmatpush1.msra.mxu0 0.0
    %370 = vmatprep.subr.mxu0 0.0
    %371 = vmatpush1.msra.mxu0 0.0
    %372 = vmatprep.subr.mxu0 0.0
    %373 = vmatpush1.msra.mxu0 0.0
    %374 = vmatprep.subr.mxu0 0.0
    %375 = vmatpush1.msra.mxu0 0.0
    %376 = vmatprep.subr.mxu0 0.0
    %377 = vmatpush1.msra.mxu0 0.0
    %378 = vmatprep.subr.mxu0 0.0
    %379 = vmatpush1.msra.mxu0 0.0
    %380 = vmatprep.subr.mxu0 0.0
    %381 = vmatpush1.msra.mxu0 0.0
    %382 = vmatprep.subr.mxu0 0.0
    %383 = vmatpush1.msra.mxu0 0.0
    %384 = vmatprep.subr.mxu0 0.0
    %385 = vmatpush1.msra.mxu0 0.0
    %386 = vmatprep.subr.mxu0 0.0
    %387 = vmatpush1.msra.mxu0 0.0
    %388 = vmatprep.subr.mxu0 0.0
    %389 = vmatpush1.msra.mxu0 0.0
    %390 = vmatprep.subr.mxu0 0.0
    %391 = vmatpush1.msra.mxu0 0.0
    %392 = vmatprep.subr.mxu0 0.0
    %393 = vmatpush1.msra.mxu0 0.0
    %394 = vmatprep.subr.mxu0 0.0
    %395 = vmatpush1.msra.mxu0 0.0
    %396 = vmatprep.subr.mxu0 0.0
    %397 = vmatpush1.msra.mxu0 0.0
    %398 = vmatprep.subr.mxu0 0.0
    %399 = vmatpush1.msra.mxu0 0.0
    %400 = vmatprep.mubr.f32.mxu0 0.0
    %401 = vmatmul.mubr.f32.gmra.mrb[0].mxu0 %v331
    %v402 = vpop.f32.mrb[0].mxu0
    %v403 = vadd.f32 %v321, %v402
    %v404 = vpop.f32.mrb[0].mxu0
    %405 = vmatprep.mubr.f32.mxu0 0.0
    %406 = vmatmul.mubr.f32.gmra.mrb[0].mxu0 %v334
    %v407 = vpop.f32.mrb[0].mxu0
    %v408 = vadd.f32 %v322, %v407
    %v409 = vpop.f32.mrb[0].mxu0
    %410 = vdwg.mxu0
    %v412 = vsel %vm329, %v241, 0
    %v415 = vsel %vm329, %v242, 0
    %417 = vmatprep.subr.mxu0 0.0
    %418 = vmatpush1.msra.mxu0 %v182
    %419 = vmatprep.subr.mxu0 0.0
    %420 = vmatpush1.msra.mxu0 0.0
    %421 = vmatprep.subr.mxu0 0.0
    %422 = vmatpush1.msra.mxu0 0.0
    %423 = vmatprep.subr.mxu0 0.0
    %424 = vmatpush1.msra.mxu0 0.0
    %425 = vmatprep.subr.mxu0 0.0
    %426 = vmatpush1.msra.mxu0 0.0
    %427 = vmatprep.subr.mxu0 0.0
    %428 = vmatpush1.msra.mxu0 0.0
    %429 = vmatprep.subr.mxu0 0.0
    %430 = vmatpush1.msra.mxu0 0.0
    %431 = vmatprep.subr.mxu0 0.0
    %432 = vmatpush1.msra.mxu0 0.0
    %433 = vmatprep.subr.mxu0 0.0
    %434 = vmatpush1.msra.mxu0 0.0
    %435 = vmatprep.subr.mxu0 0.0
    %436 = vmatpush1.msra.mxu0 0.0
    %437 = vmatprep.subr.mxu0 0.0
    %438 = vmatpush1.msra.mxu0 0.0
    %439 = vmatprep.subr.mxu0 0.0
    %440 = vmatpush1.msra.mxu0 0.0
    %441 = vmatprep.subr.mxu0 0.0
    %442 = vmatpush1.msra.mxu0 0.0
    %443 = vmatprep.subr.mxu0 0.0
    %444 = vmatpush1.msra.mxu0 0.0
    %445 = vmatprep.subr.mxu0 0.0
    %446 = vmatpush1.msra.mxu0 0.0
    %447 = vmatprep.subr.mxu0 0.0
    %448 = vmatpush1.msra.mxu0 0.0
    %449 = vmatprep.subr.mxu0 0.0
    %450 = vmatpush1.msra.mxu0 0.0
    %451 = vmatprep.subr.mxu0 0.0
    %452 = vmatpush1.msra.mxu0 0.0
    %453 = vmatprep.subr.mxu0 0.0
    %454 = vmatpush1.msra.mxu0 0.0
    %455 = vmatprep.subr.mxu0 0.0
    %456 = vmatpush1.msra.mxu0 0.0
    %457 = vmatprep.subr.mxu0 0.0
    %458 = vmatpush1.msra.mxu0 0.0
    %459 = vmatprep.subr.mxu0 0.0
    %460 = vmatpush1.msra.mxu0 0.0
    %461 = vmatprep.subr.mxu0 0.0
    %462 = vmatpush1.msra.mxu0 0.0
    %463 = vmatprep.subr.mxu0 0.0
    %464 = vmatpush1.msra.mxu0 0.0
    %465 = vmatprep.subr.mxu0 0.0
    %466 = vmatpush1.msra.mxu0 0.0
    %467 = vmatprep.subr.mxu0 0.0
    %468 = vmatpush1.msra.mxu0 0.0
    %469 = vmatprep.subr.mxu0 0.0
    %470 = vmatpush1.msra.mxu0 0.0
    %471 = vmatprep.subr.mxu0 0.0
    %472 = vmatpush1.msra.mxu0 0.0
    %473 = vmatprep.subr.mxu0 0.0
    %474 = vmatpush1.msra.mxu0 0.0
    %475 = vmatprep.subr.mxu0 0.0
    %476 = vmatpush1.msra.mxu0 0.0
    %477 = vmatprep.subr.mxu0 0.0
    %478 = vmatpush1.msra.mxu0 0.0
    %479 = vmatprep.subr.mxu0 0.0
    %480 = vmatpush1.msra.mxu0 0.0
    %481 = vmatprep.mubr.f32.mxu0 0.0
    %482 = vmatmul.mubr.f32.gmra.mrb[0].mxu0 %v412
    %v483 = vpop.f32.mrb[0].mxu0
    %v484 = vadd.f32 %v323, %v483
    %v485 = vpop.f32.mrb[0].mxu0
    %486 = vmatprep.mubr.f32.mxu0 0.0
    %487 = vmatmul.mubr.f32.gmra.mrb[0].mxu0 %v415
    %v488 = vpop.f32.mrb[0].mxu0
    %v489 = vadd.f32 %v324, %v488
    %v490 = vpop.f32.mrb[0].mxu0
    %491 = vdwg.mxu0
    %v493 = vsel %vm329, %v273, 0
    %v496 = vsel %vm329, %v274, 0
    %498 = vmatprep.subr.mxu0 0.0
    %499 = vmatpush1.msra.mxu0 %v183
    %500 = vmatprep.subr.mxu0 0.0
    %501 = vmatpush1.msra.mxu0 0.0
    %502 = vmatprep.subr.mxu0 0.0
    %503 = vmatpush1.msra.mxu0 0.0
    %504 = vmatprep.subr.mxu0 0.0
    %505 = vmatpush1.msra.mxu0 0.0
    %506 = vmatprep.subr.mxu0 0.0
    %507 = vmatpush1.msra.mxu0 0.0
    %508 = vmatprep.subr.mxu0 0.0
    %509 = vmatpush1.msra.mxu0 0.0
    %510 = vmatprep.subr.mxu0 0.0
    %511 = vmatpush1.msra.mxu0 0.0
    %512 = vmatprep.subr.mxu0 0.0
    %513 = vmatpush1.msra.mxu0 0.0
    %514 = vmatprep.subr.mxu0 0.0
    %515 = vmatpush1.msra.mxu0 0.0
    %516 = vmatprep.subr.mxu0 0.0
    %517 = vmatpush1.msra.mxu0 0.0
    %518 = vmatprep.subr.mxu0 0.0
    %519 = vmatpush1.msra.mxu0 0.0
    %520 = vmatprep.subr.mxu0 0.0
    %521 = vmatpush1.msra.mxu0 0.0
    %522 = vmatprep.subr.mxu0 0.0
    %523 = vmatpush1.msra.mxu0 0.0
    %524 = vmatprep.subr.mxu0 0.0
    %525 = vmatpush1.msra.mxu0 0.0
    %526 = vmatprep.subr.mxu0 0.0
    %527 = vmatpush1.msra.mxu0 0.0
    %528 = vmatprep.subr.mxu0 0.0
    %529 = vmatpush1.msra.mxu0 0.0
    %530 = vmatprep.subr.mxu0 0.0
    %531 = vmatpush1.msra.mxu0 0.0
    %532 = vmatprep.subr.mxu0 0.0
    %533 = vmatpush1.msra.mxu0 0.0
    %534 = vmatprep.subr.mxu0 0.0
    %535 = vmatpush1.msra.mxu0 0.0
    %536 = vmatprep.subr.mxu0 0.0
    %537 = vmatpush1.msra.mxu0 0.0
    %538 = vmatprep.subr.mxu0 0.0
    %539 = vmatpush1.msra.mxu0 0.0
    %540 = vmatprep.subr.mxu0 0.0
    %541 = vmatpush1.msra.mxu0 0.0
    %542 = vmatprep.subr.mxu0 0.0
    %543 = vmatpush1.msra.mxu0 0.0
    %544 = vmatprep.subr.mxu0 0.0
    %545 = vmatpush1.msra.mxu0 0.0
    %546 = vmatprep.subr.mxu0 0.0
    %547 = vmatpush1.msra.mxu0 0.0
    %548 = vmatprep.subr.mxu0 0.0
    %549 = vmatpush1.msra.mxu0 0.0
    %550 = vmatprep.subr.mxu0 0.0
    %551 = vmatpush1.msra.mxu0 0.0
    %552 = vmatprep.subr.mxu0 0.0
    %553 = vmatpush1.msra.mxu0 0.0
    %554 = vmatprep.subr.mxu0 0.0
    %555 = vmatpush1.msra.mxu0 0.0
    %556 = vmatprep.subr.mxu0 0.0
    %557 = vmatpush1.msra.mxu0 0.0
    %558 = vmatprep.subr.mxu0 0.0
    %559 = vmatpush1.msra.mxu0 0.0
    %560 = vmatprep.subr.mxu0 0.0
    %561 = vmatpush1.msra.mxu0 0.0
    %562 = vmatprep.mubr.f32.mxu0 0.0
    %563 = vmatmul.mubr.f32.gmra.mrb[0].mxu0 %v493
    %v564 = vpop.f32.mrb[0].mxu0
    %v565 = vadd.f32 %v325, %v564
    %v566 = vpop.f32.mrb[0].mxu0
    %567 = vmatprep.mubr.f32.mxu0 0.0
    %568 = vmatmul.mubr.f32.gmra.mrb[0].mxu0 %v496
    %v569 = vpop.f32.mrb[0].mxu0
    %v570 = vadd.f32 %v326, %v569
    %v571 = vpop.f32.mrb[0].mxu0
    %572 = vdwg.mxu0
    %v574 = vsel %vm329, %v305, 0
    %v577 = vsel %vm329, %v306, 0
    %579 = vmatprep.subr.mxu0 0.0
    %580 = vmatpush1.msra.mxu0 %v184
    %581 = vmatprep.subr.mxu0 0.0
    %582 = vmatpush1.msra.mxu0 0.0
    %583 = vmatprep.subr.mxu0 0.0
    %584 = vmatpush1.msra.mxu0 0.0
    %585 = vmatprep.subr.mxu0 0.0
    %586 = vmatpush1.msra.mxu0 0.0
    %587 = vmatprep.subr.mxu0 0.0
    %588 = vmatpush1.msra.mxu0 0.0
    %589 = vmatprep.subr.mxu0 0.0
    %590 = vmatpush1.msra.mxu0 0.0
    %591 = vmatprep.subr.mxu0 0.0
    %592 = vmatpush1.msra.mxu0 0.0
    %593 = vmatprep.subr.mxu0 0.0
    %594 = vmatpush1.msra.mxu0 0.0
    %595 = vmatprep.subr.mxu0 0.0
    %596 = vmatpush1.msra.mxu0 0.0
    %597 = vmatprep.subr.mxu0 0.0
    %598 = vmatpush1.msra.mxu0 0.0
    %599 = vmatprep.subr.mxu0 0.0
    %600 = vmatpush1.msra.mxu0 0.0
    %601 = vmatprep.subr.mxu0 0.0
    %602 = vmatpush1.msra.mxu0 0.0
    %603 = vmatprep.subr.mxu0 0.0
    %604 = vmatpush1.msra.mxu0 0.0
    %605 = vmatprep.subr.mxu0 0.0
    %606 = vmatpush1.msra.mxu0 0.0
    %607 = vmatprep.subr.mxu0 0.0
    %608 = vmatpush1.msra.mxu0 0.0
    %609 = vmatprep.subr.mxu0 0.0
    %610 = vmatpush1.msra.mxu0 0.0
    %611 = vmatprep.subr.mxu0 0.0
    %612 = vmatpush1.msra.mxu0 0.0
    %613 = vmatprep.subr.mxu0 0.0
    %614 = vmatpush1.msra.mxu0 0.0
    %615 = vmatprep.subr.mxu0 0.0
    %616 = vmatpush1.msra.mxu0 0.0
    %617 = vmatprep.subr.mxu0 0.0
    %618 = vmatpush1.msra.mxu0 0.0
    %619 = vmatprep.subr.mxu0 0.0
    %620 = vmatpush1.msra.mxu0 0.0
    %621 = vmatprep.subr.mxu0 0.0
    %622 = vmatpush1.msra.mxu0 0.0
    %623 = vmatprep.subr.mxu0 0.0
    %624 = vmatpush1.msra.mxu0 0.0
    %625 = vmatprep.subr.mxu0 0.0
    %626 = vmatpush1.msra.mxu0 0.0
    %627 = vmatprep.subr.mxu0 0.0
    %628 = vmatpush1.msra.mxu0 0.0
    %629 = vmatprep.subr.mxu0 0.0
    %630 = vmatpush1.msra.mxu0 0.0
    %631 = vmatprep.subr.mxu0 0.0
    %632 = vmatpush1.msra.mxu0 0.0
    %633 = vmatprep.subr.mxu0 0.0
    %634 = vmatpush1.msra.mxu0 0.0
    %635 = vmatprep.subr.mxu0 0.0
    %636 = vmatpush1.msra.mxu0 0.0
    %637 = vmatprep.subr.mxu0 0.0
    %638 = vmatpush1.msra.mxu0 0.0
    %639 = vmatprep.subr.mxu0 0.0
    %640 = vmatpush1.msra.mxu0 0.0
    %641 = vmatprep.subr.mxu0 0.0
    %642 = vmatpush1.msra.mxu0 0.0
    %643 = vmatprep.mubr.f32.mxu0 0.0
    %644 = vmatmul.mubr.f32.gmra.mrb[0].mxu0 %v574
    %v645 = vpop.f32.mrb[0].mxu0
    %v646 = vadd.f32 %v327, %v645
    %v647 = vpop.f32.mrb[0].mxu0
    %648 = vmatprep.mubr.f32.mxu0 0.0
    %649 = vmatmul.mubr.f32.gmra.mrb[0].mxu0 %v577
    %v650 = vpop.f32.mrb[0].mxu0
    %v651 = vadd.f32 %v328, %v650
    %v652 = vpop.f32.mrb[0].mxu0
    %653 = vdwg.mxu0
    %vm654 = vcmask 130048
    %v655 = vsel %vm654, %v403, -inf
    %656 = vmax.xlane.f32.xlu0 %v655
    %v657 = vpop.xlane.xlu0 %656
    %v658 = vsel %vm654, %v408, -inf
    %659 = vmax.xlane.f32.xlu0 %v658
    %v660 = vpop.xlane.xlu0 %659
    %v661 = vsel %vm654, %v484, -inf
    %662 = vmax.xlane.f32.xlu0 %v661
    %v663 = vpop.xlane.xlu0 %662
    %v664 = vsel %vm654, %v489, -inf
    %665 = vmax.xlane.f32.xlu0 %v664
    %v666 = vpop.xlane.xlu0 %665
    %v667 = vsel %vm654, %v565, -inf
    %668 = vmax.xlane.f32.xlu0 %v667
    %v669 = vpop.xlane.xlu0 %668
    %v670 = vsel %vm654, %v570, -inf
    %671 = vmax.xlane.f32.xlu0 %v670
    %v672 = vpop.xlane.xlu0 %671
    %v673 = vsel %vm654, %v646, -inf
    %674 = vmax.xlane.f32.xlu0 %v673
    %v675 = vpop.xlane.xlu0 %674
    %v676 = vsel %vm654, %v651, -inf
    %677 = vmax.xlane.f32.xlu0 %v676
    %v678 = vpop.xlane.xlu0 %677
    %v679 = vsub.f32 %v403, %v657
    %v680 = vsub.f32 %v408, %v660
    %v681 = vsub.f32 %v484, %v663
    %v682 = vsub.f32 %v489, %v666
    %v683 = vsub.f32 %v565, %v669
    %v684 = vsub.f32 %v570, %v672
    %v685 = vsub.f32 %v646, %v675
    %v686 = vsub.f32 %v651, %v678
    %v687 = vmul.f32 %v679, 1.442695
    %v688 = vpow.pop %v687
    %v689 = vmul.f32 %v680, 1.442695
    %v690 = vpow.pop %v689
    %v691 = vmul.f32 %v681, 1.442695
    %v692 = vpow.pop %v691
    %v693 = vmul.f32 %v682, 1.442695
    %v694 = vpow.pop %v693
    %v695 = vmul.f32 %v683, 1.442695
    %v696 = vpow.pop %v695
    %v697 = vmul.f32 %v684, 1.442695
    %v698 = vpow.pop %v697
    %v699 = vmul.f32 %v685, 1.442695
    %v700 = vpow.pop %v699
    %v701 = vmul.f32 %v686, 1.442695
    %v702 = vpow.pop %v701
    %v703 = vsel %vm654, %v688, 0.0
    %704 = vadd.xlane.f32.xlu0 %v703
    %v705 = vpop.xlane.xlu0 %704
    %v706 = vsel %vm654, %v690, 0.0
    %707 = vadd.xlane.f32.xlu0 %v706
    %v708 = vpop.xlane.xlu0 %707
    %v709 = vsel %vm654, %v692, 0.0
    %710 = vadd.xlane.f32.xlu0 %v709
    %v711 = vpop.xlane.xlu0 %710
    %v712 = vsel %vm654, %v694, 0.0
    %713 = vadd.xlane.f32.xlu0 %v712
    %v714 = vpop.xlane.xlu0 %713
    %v715 = vsel %vm654, %v696, 0.0
    %716 = vadd.xlane.f32.xlu0 %v715
    %v717 = vpop.xlane.xlu0 %716
    %v718 = vsel %vm654, %v698, 0.0
    %719 = vadd.xlane.f32.xlu0 %v718
    %v720 = vpop.xlane.xlu0 %719
    %v721 = vsel %vm654, %v700, 0.0
    %722 = vadd.xlane.f32.xlu0 %v721
    %v723 = vpop.xlane.xlu0 %722
    %v724 = vsel %vm654, %v702, 0.0
    %725 = vadd.xlane.f32.xlu0 %v724
    %v726 = vpop.xlane.xlu0 %725
    %v727 = vrcp.pop %v705
    %v728 = vrcp.pop %v708
    %v729 = vrcp.pop %v711
    %v730 = vrcp.pop %v714
    %v731 = vrcp.pop %v717
    %v732 = vrcp.pop %v720
    %v733 = vrcp.pop %v723
    %v734 = vrcp.pop %v726
    %v735 = vmul.f32 %v688, %v727
    %v736 = vmul.f32 %v690, %v728
    %v737 = vmul.f32 %v692, %v729
    %v738 = vmul.f32 %v694, %v730
    %v739 = vmul.f32 %v696, %v731
    %v740 = vmul.f32 %v698, %v732
    %v741 = vmul.f32 %v700, %v733
    %v742 = vmul.f32 %v702, %v734
    %v744 = vsel %vm654, %v735, 0
    %v747 = vsel %vm654, %v736, 0
    %v750 = vsel %vm654, %v185, 0
    %752 = vmatprep.subr.mxu0 0.0
    %753 = vmatpush1.xpose.msra.mxu0 %v750
    %754 = vmatprep.subr.mxu0 0.0
    %755 = vmatpush1.xpose.msra.mxu0 0.0
    %756 = vmatprep.subr.mxu0 0.0
    %757 = vmatpush1.xpose.msra.mxu0 0.0
    %758 = vmatprep.subr.mxu0 0.0
    %759 = vmatpush1.xpose.msra.mxu0 0.0
    %760 = vmatprep.subr.mxu0 0.0
    %761 = vmatpush1.xpose.msra.mxu0 0.0
    %762 = vmatprep.subr.mxu0 0.0
    %763 = vmatpush1.xpose.msra.mxu0 0.0
    %764 = vmatprep.subr.mxu0 0.0
    %765 = vmatpush1.xpose.msra.mxu0 0.0
    %766 = vmatprep.subr.mxu0 0.0
    %767 = vmatpush1.xpose.msra.mxu0 0.0
    %768 = vmatprep.subr.mxu0 0.0
    %769 = vmatpush1.xpose.msra.mxu0 0.0
    %770 = vmatprep.subr.mxu0 0.0
    %771 = vmatpush1.xpose.msra.mxu0 0.0
    %772 = vmatprep.subr.mxu0 0.0
    %773 = vmatpush1.xpose.msra.mxu0 0.0
    %774 = vmatprep.subr.mxu0 0.0
    %775 = vmatpush1.xpose.msra.mxu0 0.0
    %776 = vmatprep.subr.mxu0 0.0
    %777 = vmatpush1.xpose.msra.mxu0 0.0
    %778 = vmatprep.subr.mxu0 0.0
    %779 = vmatpush1.xpose.msra.mxu0 0.0
    %780 = vmatprep.subr.mxu0 0.0
    %781 = vmatpush1.xpose.msra.mxu0 0.0
    %782 = vmatprep.subr.mxu0 0.0
    %783 = vmatpush1.xpose.msra.mxu0 0.0
    %784 = vmatprep.subr.mxu0 0.0
    %785 = vmatpush1.xpose.msra.mxu0 0.0
    %786 = vmatprep.subr.mxu0 0.0
    %787 = vmatpush1.xpose.msra.mxu0 0.0
    %788 = vmatprep.subr.mxu0 0.0
    %789 = vmatpush1.xpose.msra.mxu0 0.0
    %790 = vmatprep.subr.mxu0 0.0
    %791 = vmatpush1.xpose.msra.mxu0 0.0
    %792 = vmatprep.subr.mxu0 0.0
    %793 = vmatpush1.xpose.msra.mxu0 0.0
    %794 = vmatprep.subr.mxu0 0.0
    %795 = vmatpush1.xpose.msra.mxu0 0.0
    %796 = vmatprep.subr.mxu0 0.0
    %797 = vmatpush1.xpose.msra.mxu0 0.0
    %798 = vmatprep.subr.mxu0 0.0
    %799 = vmatpush1.xpose.msra.mxu0 0.0
    %800 = vmatprep.subr.mxu0 0.0
    %801 = vmatpush1.xpose.msra.mxu0 0.0
    %802 = vmatprep.subr.mxu0 0.0
    %803 = vmatpush1.xpose.msra.mxu0 0.0
    %804 = vmatprep.subr.mxu0 0.0
    %805 = vmatpush1.xpose.msra.mxu0 0.0
    %806 = vmatprep.subr.mxu0 0.0
    %807 = vmatpush1.xpose.msra.mxu0 0.0
    %808 = vmatprep.subr.mxu0 0.0
    %809 = vmatpush1.xpose.msra.mxu0 0.0
    %810 = vmatprep.subr.mxu0 0.0
    %811 = vmatpush1.xpose.msra.mxu0 0.0
    %812 = vmatprep.subr.mxu0 0.0
    %813 = vmatpush1.xpose.msra.mxu0 0.0
    %814 = vmatprep.subr.mxu0 0.0
    %815 = vmatpush1.xpose.msra.mxu0 0.0
    %816 = vmatprep.mubr.f32.mxu0 0.0
    %817 = vmatmul.mubr.f32.gmra.mrb[0].mxu0 %v744
    %v818 = vpop.f32.mrb[0].mxu0
    %v819 = vadd.f32 0.0, %v818
    %v820 = vpop.f32.mrb[0].mxu0
    %821 = vmatprep.mubr.f32.mxu0 0.0
    %822 = vmatmul.mubr.f32.gmra.mrb[0].mxu0 %v747
    %v823 = vpop.f32.mrb[0].mxu0
    %v824 = vadd.f32 0.0, %v823
    %v825 = vpop.f32.mrb[0].mxu0
    %826 = vdwg.mxu0
    %v828 = vsel %vm654, %v737, 0
    %v831 = vsel %vm654, %v738, 0
    %v834 = vsel %vm654, %v186, 0
    %836 = vmatprep.subr.mxu0 0.0
    %837 = vmatpush1.xpose.msra.mxu0 %v834
    %838 = vmatprep.subr.mxu0 0.0
    %839 = vmatpush1.xpose.msra.mxu0 0.0
    %840 = vmatprep.subr.mxu0 0.0
    %841 = vmatpush1.xpose.msra.mxu0 0.0
    %842 = vmatprep.subr.mxu0 0.0
    %843 = vmatpush1.xpose.msra.mxu0 0.0
    %844 = vmatprep.subr.mxu0 0.0
    %845 = vmatpush1.xpose.msra.mxu0 0.0
    %846 = vmatprep.subr.mxu0 0.0
    %847 = vmatpush1.xpose.msra.mxu0 0.0
    %848 = vmatprep.subr.mxu0 0.0
    %849 = vmatpush1.xpose.msra.mxu0 0.0
    %850 = vmatprep.subr.mxu0 0.0
    %851 = vmatpush1.xpose.msra.mxu0 0.0
    %852 = vmatprep.subr.mxu0 0.0
    %853 = vmatpush1.xpose.msra.mxu0 0.0
    %854 = vmatprep.subr.mxu0 0.0
    %855 = vmatpush1.xpose.msra.mxu0 0.0
    %856 = vmatprep.subr.mxu0 0.0
    %857 = vmatpush1.xpose.msra.mxu0 0.0
    %858 = vmatprep.subr.mxu0 0.0
    %859 = vmatpush1.xpose.msra.mxu0 0.0
    %860 = vmatprep.subr.mxu0 0.0
    %861 = vmatpush1.xpose.msra.mxu0 0.0
    %862 = vmatprep.subr.mxu0 0.0
    %863 = vmatpush1.xpose.msra.mxu0 0.0
    %864 = vmatprep.subr.mxu0 0.0
    %865 = vmatpush1.xpose.msra.mxu0 0.0
    %866 = vmatprep.subr.mxu0 0.0
    %867 = vmatpush1.xpose.msra.mxu0 0.0
    %868 = vmatprep.subr.mxu0 0.0
    %869 = vmatpush1.xpose.msra.mxu0 0.0
    %870 = vmatprep.subr.mxu0 0.0
    %871 = vmatpush1.xpose.msra.mxu0 0.0
    %872 = vmatprep.subr.mxu0 0.0
    %873 = vmatpush1.xpose.msra.mxu0 0.0
    %874 = vmatprep.subr.mxu0 0.0
    %875 = vmatpush1.xpose.msra.mxu0 0.0
    %876 = vmatprep.subr.mxu0 0.0
    %877 = vmatpush1.xpose.msra.mxu0 0.0
    %878 = vmatprep.subr.mxu0 0.0
    %879 = vmatpush1.xpose.msra.mxu0 0.0
    %880 = vmatprep.subr.mxu0 0.0
    %881 = vmatpush1.xpose.msra.mxu0 0.0
    %882 = vmatprep.subr.mxu0 0.0
    %883 = vmatpush1.xpose.msra.mxu0 0.0
    %884 = vmatprep.subr.mxu0 0.0
    %885 = vmatpush1.xpose.msra.mxu0 0.0
    %886 = vmatprep.subr.mxu0 0.0
    %887 = vmatpush1.xpose.msra.mxu0 0.0
    %888 = vmatprep.subr.mxu0 0.0
    %889 = vmatpush1.xpose.msra.mxu0 0.0
    %890 = vmatprep.subr.mxu0 0.0
    %891 = vmatpush1.xpose.msra.mxu0 0.0
    %892 = vmatprep.subr.mxu0 0.0
    %893 = vmatpush1.xpose.msra.mxu0 0.0
    %894 = vmatprep.subr.mxu0 0.0
    %895 = vmatpush1.xpose.msra.mxu0 0.0
    %896 = vmatprep.subr.mxu0 0.0
    %897 = vmatpush1.xpose.msra.mxu0 0.0
    %898 = vmatprep.subr.mxu0 0.0
    %899 = vmatpush1.xpose.msra.mxu0 0.0
    %900 = vmatprep.mubr.f32.mxu0 0.0
    %901 = vmatmul.mubr.f32.gmra.mrb[0].mxu0 %v828
    %v902 = vpop.f32.mrb[0].mxu0
    %v903 = vadd.f32 0.0, %v902
    %v904 = vpop.f32.mrb[0].mxu0
    %905 = vmatprep.mubr.f32.mxu0 0.0
    %906 = vmatmul.mubr.f32.gmra.mrb[0].mxu0 %v831
    %v907 = vpop.f32.mrb[0].mxu0
    %v908 = vadd.f32 0.0, %v907
    %v909 = vpop.f32.mrb[0].mxu0
    %910 = vdwg.mxu0
    %v912 = vsel %vm654, %v739, 0
    %v915 = vsel %vm654, %v740, 0
    %v918 = vsel %vm654, %v187, 0
    %920 = vmatprep.subr.mxu0 0.0
    %921 = vmatpush1.xpose.msra.mxu0 %v918
    %922 = vmatprep.subr.mxu0 0.0
    %923 = vmatpush1.xpose.msra.mxu0 0.0
    %924 = vmatprep.subr.mxu0 0.0
    %925 = vmatpush1.xpose.msra.mxu0 0.0
    %926 = vmatprep.subr.mxu0 0.0
    %927 = vmatpush1.xpose.msra.mxu0 0.0
    %928 = vmatprep.subr.mxu0 0.0
    %929 = vmatpush1.xpose.msra.mxu0 0.0
    %930 = vmatprep.subr.mxu0 0.0
    %931 = vmatpush1.xpose.msra.mxu0 0.0
    %932 = vmatprep.subr.mxu0 0.0
    %933 = vmatpush1.xpose.msra.mxu0 0.0
    %934 = vmatprep.subr.mxu0 0.0
    %935 = vmatpush1.xpose.msra.mxu0 0.0
    %936 = vmatprep.subr.mxu0 0.0
    %937 = vmatpush1.xpose.msra.mxu0 0.0
    %938 = vmatprep.subr.mxu0 0.0
    %939 = vmatpush1.xpose.msra.mxu0 0.0
    %940 = vmatprep.subr.mxu0 0.0
    %941 = vmatpush1.xpose.msra.mxu0 0.0
    %942 = vmatprep.subr.mxu0 0.0
    %943 = vmatpush1.xpose.msra.mxu0 0.0
    %944 = vmatprep.subr.mxu0 0.0
    %945 = vmatpush1.xpose.msra.mxu0 0.0
    %946 = vmatprep.subr.mxu0 0.0
    %947 = vmatpush1.xpose.msra.mxu0 0.0
    %948 = vmatprep.subr.mxu0 0.0
    %949 = vmatpush1.xpose.msra.mxu0 0.0
    %950 = vmatprep.subr.mxu0 0.0
    %951 = vmatpush1.xpose.msra.mxu0 0.0
    %952 = vmatprep.subr.mxu0 0.0
    %953 = vmatpush1.xpose.msra.mxu0 0.0
    %954 = vmatprep.subr.mxu0 0.0
    %955 = vmatpush1.xpose.msra.mxu0 0.0
    %956 = vmatprep.subr.mxu0 0.0
    %957 = vmatpush1.xpose.msra.mxu0 0.0
    %958 = vmatprep.subr.mxu0 0.0
    %959 = vmatpush1.xpose.msra.mxu0 0.0
    %960 = vmatprep.subr.mxu0 0.0
    %961 = vmatpush1.xpose.msra.mxu0 0.0
    %962 = vmatprep.subr.mxu0 0.0
    %963 = vmatpush1.xpose.msra.mxu0 0.0
    %964 = vmatprep.subr.mxu0 0.0
    %965 = vmatpush1.xpose.msra.mxu0 0.0
    %966 = vmatprep.subr.mxu0 0.0
    %967 = vmatpush1.xpose.msra.mxu0 0.0
    %968 = vmatprep.subr.mxu0 0.0
    %969 = vmatpush1.xpose.msra.mxu0 0.0
    %970 = vmatprep.subr.mxu0 0.0
    %971 = vmatpush1.xpose.msra.mxu0 0.0
    %972 = vmatprep.subr.mxu0 0.0
    %973 = vmatpush1.xpose.msra.mxu0 0.0
    %974 = vmatprep.subr.mxu0 0.0
    %975 = vmatpush1.xpose.msra.mxu0 0.0
    %976 = vmatprep.subr.mxu0 0.0
    %977 = vmatpush1.xpose.msra.mxu0 0.0
    %978 = vmatprep.subr.mxu0 0.0
    %979 = vmatpush1.xpose.msra.mxu0 0.0
    %980 = vmatprep.subr.mxu0 0.0
    %981 = vmatpush1.xpose.msra.mxu0 0.0
    %982 = vmatprep.subr.mxu0 0.0
    %983 = vmatpush1.xpose.msra.mxu0 0.0
    %984 = vmatprep.mubr.f32.mxu0 0.0
    %985 = vmatmul.mubr.f32.gmra.mrb[0].mxu0 %v912
    %v986 = vpop.f32.mrb[0].mxu0
    %v987 = vadd.f32 0.0, %v986
    %v988 = vpop.f32.mrb[0].mxu0
    %989 = vmatprep.mubr.f32.mxu0 0.0
    %990 = vmatmul.mubr.f32.gmra.mrb[0].mxu0 %v915
    %v991 = vpop.f32.mrb[0].mxu0
    %v992 = vadd.f32 0.0, %v991
    %v993 = vpop.f32.mrb[0].mxu0
    %994 = vdwg.mxu0
    %v996 = vsel %vm654, %v741, 0
    %v999 = vsel %vm654, %v742, 0
    %v1002 = vsel %vm654, %v188, 0
    %1004 = vmatprep.subr.mxu0 0.0
    %1005 = vmatpush1.xpose.msra.mxu0 %v1002
    %1006 = vmatprep.subr.mxu0 0.0
    %1007 = vmatpush1.xpose.msra.mxu0 0.0
    %1008 = vmatprep.subr.mxu0 0.0
    %1009 = vmatpush1.xpose.msra.mxu0 0.0
    %1010 = vmatprep.subr.mxu0 0.0
    %1011 = vmatpush1.xpose.msra.mxu0 0.0
    %1012 = vmatprep.subr.mxu0 0.0
    %1013 = vmatpush1.xpose.msra.mxu0 0.0
    %1014 = vmatprep.subr.mxu0 0.0
    %1015 = vmatpush1.xpose.msra.mxu0 0.0
    %1016 = vmatprep.subr.mxu0 0.0
    %1017 = vmatpush1.xpose.msra.mxu0 0.0
    %1018 = vmatprep.subr.mxu0 0.0
    %1019 = vmatpush1.xpose.msra.mxu0 0.0
    %1020 = vmatprep.subr.mxu0 0.0
    %1021 = vmatpush1.xpose.msra.mxu0 0.0
    %1022 = vmatprep.subr.mxu0 0.0
    %1023 = vmatpush1.xpose.msra.mxu0 0.0
    %1024 = vmatprep.subr.mxu0 0.0
    %1025 = vmatpush1.xpose.msra.mxu0 0.0
    %1026 = vmatprep.subr.mxu0 0.0
    %1027 = vmatpush1.xpose.msra.mxu0 0.0
    %1028 = vmatprep.subr.mxu0 0.0
    %1029 = vmatpush1.xpose.msra.mxu0 0.0
    %1030 = vmatprep.subr.mxu0 0.0
    %1031 = vmatpush1.xpose.msra.mxu0 0.0
    %1032 = vmatprep.subr.mxu0 0.0
    %1033 = vmatpush1.xpose.msra.mxu0 0.0
    %1034 = vmatprep.subr.mxu0 0.0
    %1035 = vmatpush1.xpose.msra.mxu0 0.0
    %1036 = vmatprep.subr.mxu0 0.0
    %1037 = vmatpush1.xpose.msra.mxu0 0.0
    %1038 = vmatprep.subr.mxu0 0.0
    %1039 = vmatpush1.xpose.msra.mxu0 0.0
    %1040 = vmatprep.subr.mxu0 0.0
    %1041 = vmatpush1.xpose.msra.mxu0 0.0
    %1042 = vmatprep.subr.mxu0 0.0
    %1043 = vmatpush1.xpose.msra.mxu0 0.0
    %1044 = vmatprep.subr.mxu0 0.0
    %1045 = vmatpush1.xpose.msra.mxu0 0.0
    %1046 = vmatprep.subr.mxu0 0.0
    %1047 = vmatpush1.xpose.msra.mxu0 0.0
    %1048 = vmatprep.subr.mxu0 0.0
    %1049 = vmatpush1.xpose.msra.mxu0 0.0
    %1050 = vmatprep.subr.mxu0 0.0
    %1051 = vmatpush1.xpose.msra.mxu0 0.0
    %1052 = vmatprep.subr.mxu0 0.0
    %1053 = vmatpush1.xpose.msra.mxu0 0.0
    %1054 = vmatprep.subr.mxu0 0.0
    %1055 = vmatpush1.xpose.msra.mxu0 0.0
    %1056 = vmatprep.subr.mxu0 0.0
    %1057 = vmatpush1.xpose.msra.mxu0 0.0
    %1058 = vmatprep.subr.mxu0 0.0
    %1059 = vmatpush1.xpose.msra.mxu0 0.0
    %1060 = vmatprep.subr.mxu0 0.0
    %1061 = vmatpush1.xpose.msra.mxu0 0.0
    %1062 = vmatprep.subr.mxu0 0.0
    %1063 = vmatpush1.xpose.msra.mxu0 0.0
    %1064 = vmatprep.subr.mxu0 0.0
    %1065 = vmatpush1.xpose.msra.mxu0 0.0
    %1066 = vmatprep.subr.mxu0 0.0
    %1067 = vmatpush1.xpose.msra.mxu0 0.0
    %1068 = vmatprep.mubr.f32.mxu0 0.0
    %1069 = vmatmul.mubr.f32.gmra.mrb[0].mxu0 %v996
    %v1070 = vpop.f32.mrb[0].mxu0
    %v1071 = vadd.f32 0.0, %v1070
    %v1072 = vpop.f32.mrb[0].mxu0
    %1073 = vmatprep.mubr.f32.mxu0 0.0
    %1074 = vmatmul.mubr.f32.gmra.mrb[0].mxu0 %v999
    %v1075 = vpop.f32.mrb[0].mxu0
    %v1076 = vadd.f32 0.0, %v1075
    %v1077 = vpop.f32.mrb[0].mxu0
    %1078 = vdwg.mxu0
    %v1079 = vld [vmem:[#allocation7] sm:$0xff]
    %v1080 = vld [vmem:[#allocation7 + $0x8] sm:$0xff]
    %v1081 = vld [vmem:[#allocation7 + $0x10] sm:$0xff]
    %v1082 = vld [vmem:[#allocation7 + $0x18] sm:$0xff]
    %v1084 = vsel %vm329, %v819, 0
    %v1087 = vsel %vm329, %v824, 0
    %1089 = vmatprep.subr.mxu0 0.0
    %1090 = vmatpush1.msra.mxu0 %v1079
    %1091 = vmatprep.subr.mxu0 0.0
    %1092 = vmatpush1.msra.mxu0 0.0
    %1093 = vmatprep.subr.mxu0 0.0
    %1094 = vmatpush1.msra.mxu0 0.0
    %1095 = vmatprep.subr.mxu0 0.0
    %1096 = vmatpush1.msra.mxu0 0.0
    %1097 = vmatprep.subr.mxu0 0.0
    %1098 = vmatpush1.msra.mxu0 0.0
    %1099 = vmatprep.subr.mxu0 0.0
    %1100 = vmatpush1.msra.mxu0 0.0
    %1101 = vmatprep.subr.mxu0 0.0
    %1102 = vmatpush1.msra.mxu0 0.0
    %1103 = vmatprep.subr.mxu0 0.0
    %1104 = vmatpush1.msra.mxu0 0.0
    %1105 = vmatprep.subr.mxu0 0.0
    %1106 = vmatpush1.msra.mxu0 0.0
    %1107 = vmatprep.subr.mxu0 0.0
    %1108 = vmatpush1.msra.mxu0 0.0
    %1109 = vmatprep.subr.mxu0 0.0
    %1110 = vmatpush1.msra.mxu0 0.0
    %1111 = vmatprep.subr.mxu0 0.0
    %1112 = vmatpush1.msra.mxu0 0.0
    %1113 = vmatprep.subr.mxu0 0.0
    %1114 = vmatpush1.msra.mxu0 0.0
    %1115 = vmatprep.subr.mxu0 0.0
    %1116 = vmatpush1.msra.mxu0 0.0
    %1117 = vmatprep.subr.mxu0 0.0
    %1118 = vmatpush1.msra.mxu0 0.0
    %1119 = vmatprep.subr.mxu0 0.0
    %1120 = vmatpush1.msra.mxu0 0.0
    %1121 = vmatprep.subr.mxu0 0.0
    %1122 = vmatpush1.msra.mxu0 0.0
    %1123 = vmatprep.subr.mxu0 0.0
    %1124 = vmatpush1.msra.mxu0 0.0
    %1125 = vmatprep.subr.mxu0 0.0
    %1126 = vmatpush1.msra.mxu0 0.0
    %1127 = vmatprep.subr.mxu0 0.0
    %1128 = vmatpush1.msra.mxu0 0.0
    %1129 = vmatprep.subr.mxu0 0.0
    %1130 = vmatpush1.msra.mxu0 0.0
    %1131 = vmatprep.subr.mxu0 0.0
    %1132 = vmatpush1.msra.mxu0 0.0
    %1133 = vmatprep.subr.mxu0 0.0
    %1134 = vmatpush1.msra.mxu0 0.0
    %1135 = vmatprep.subr.mxu0 0.0
    %1136 = vmatpush1.msra.mxu0 0.0
    %1137 = vmatprep.subr.mxu0 0.0
    %1138 = vmatpush1.msra.mxu0 0.0
    %1139 = vmatprep.subr.mxu0 0.0
    %1140 = vmatpush1.msra.mxu0 0.0
    %1141 = vmatprep.subr.mxu0 0.0
    %1142 = vmatpush1.msra.mxu0 0.0
    %1143 = vmatprep.subr.mxu0 0.0
    %1144 = vmatpush1.msra.mxu0 0.0
    %1145 = vmatprep.subr.mxu0 0.0
    %1146 = vmatpush1.msra.mxu0 0.0
    %1147 = vmatprep.subr.mxu0 0.0
    %1148 = vmatpush1.msra.mxu0 0.0
    %1149 = vmatprep.subr.mxu0 0.0
    %1150 = vmatpush1.msra.mxu0 0.0
    %1151 = vmatprep.subr.mxu0 0.0
    %1152 = vmatpush1.msra.mxu0 0.0
    %1153 = vmatprep.mubr.f32.mxu0 0.0
    %1154 = vmatmul.mubr.f32.gmra.mrb[0].mxu0 %v1084
    %v1155 = vpop.f32.mrb[0].mxu0
    %v1156 = vadd.f32 0.0, %v1155
    %v1157 = vpop.f32.mrb[0].mxu0
    %1158 = vmatprep.mubr.f32.mxu0 0.0
    %1159 = vmatmul.mubr.f32.gmra.mrb[0].mxu0 %v1087
    %v1160 = vpop.f32.mrb[0].mxu0
    %v1161 = vadd.f32 0.0, %v1160
    %v1162 = vpop.f32.mrb[0].mxu0
    %1163 = vdwg.mxu0
    %v1165 = vsel %vm329, %v903, 0
    %v1168 = vsel %vm329, %v908, 0
    %1170 = vmatprep.subr.mxu0 0.0
    %1171 = vmatpush1.msra.mxu0 %v1080
    %1172 = vmatprep.subr.mxu0 0.0
    %1173 = vmatpush1.msra.mxu0 0.0
    %1174 = vmatprep.subr.mxu0 0.0
    %1175 = vmatpush1.msra.mxu0 0.0
    %1176 = vmatprep.subr.mxu0 0.0
    %1177 = vmatpush1.msra.mxu0 0.0
    %1178 = vmatprep.subr.mxu0 0.0
    %1179 = vmatpush1.msra.mxu0 0.0
    %1180 = vmatprep.subr.mxu0 0.0
    %1181 = vmatpush1.msra.mxu0 0.0
    %1182 = vmatprep.subr.mxu0 0.0
    %1183 = vmatpush1.msra.mxu0 0.0
    %1184 = vmatprep.subr.mxu0 0.0
    %1185 = vmatpush1.msra.mxu0 0.0
    %1186 = vmatprep.subr.mxu0 0.0
    %1187 = vmatpush1.msra.mxu0 0.0
    %1188 = vmatprep.subr.mxu0 0.0
    %1189 = vmatpush1.msra.mxu0 0.0
    %1190 = vmatprep.subr.mxu0 0.0
    %1191 = vmatpush1.msra.mxu0 0.0
    %1192 = vmatprep.subr.mxu0 0.0
    %1193 = vmatpush1.msra.mxu0 0.0
    %1194 = vmatprep.subr.mxu0 0.0
    %1195 = vmatpush1.msra.mxu0 0.0
    %1196 = vmatprep.subr.mxu0 0.0
    %1197 = vmatpush1.msra.mxu0 0.0
    %1198 = vmatprep.subr.mxu0 0.0
    %1199 = vmatpush1.msra.mxu0 0.0
    %1200 = vmatprep.subr.mxu0 0.0
    %1201 = vmatpush1.msra.mxu0 0.0
    %1202 = vmatprep.subr.mxu0 0.0
    %1203 = vmatpush1.msra.mxu0 0.0
    %1204 = vmatprep.subr.mxu0 0.0
    %1205 = vmatpush1.msra.mxu0 0.0
    %1206 = vmatprep.subr.mxu0 0.0
    %1207 = vmatpush1.msra.mxu0 0.0
    %1208 = vmatprep.subr.mxu0 0.0
    %1209 = vmatpush1.msra.mxu0 0.0
    %1210 = vmatprep.subr.mxu0 0.0
    %1211 = vmatpush1.msra.mxu0 0.0
    %1212 = vmatprep.subr.mxu0 0.0
    %1213 = vmatpush1.msra.mxu0 0.0
    %1214 = vmatprep.subr.mxu0 0.0
    %1215 = vmatpush1.msra.mxu0 0.0
    %1216 = vmatprep.subr.mxu0 0.0
    %1217 = vmatpush1.msra.mxu0 0.0
    %1218 = vmatprep.subr.mxu0 0.0
    %1219 = vmatpush1.msra.mxu0 0.0
    %1220 = vmatprep.subr.mxu0 0.0
    %1221 = vmatpush1.msra.mxu0 0.0
    %1222 = vmatprep.subr.mxu0 0.0
    %1223 = vmatpush1.msra.mxu0 0.0
    %1224 = vmatprep.subr.mxu0 0.0
    %1225 = vmatpush1.msra.mxu0 0.0
    %1226 = vmatprep.subr.mxu0 0.0
    %1227 = vmatpush1.msra.mxu0 0.0
    %1228 = vmatprep.subr.mxu0 0.0
    %1229 = vmatpush1.msra.mxu0 0.0
    %1230 = vmatprep.subr.mxu0 0.0
    %1231 = vmatpush1.msra.mxu0 0.0
    %1232 = vmatprep.subr.mxu0 0.0
    %1233 = vmatpush1.msra.mxu0 0.0
    %1234 = vmatprep.mubr.f32.mxu0 0.0
    %1235 = vmatmul.mubr.f32.gmra.mrb[0].mxu0 %v1165
    %v1236 = vpop.f32.mrb[0].mxu0
    %v1237 = vadd.f32 0.0, %v1236
    %v1238 = vpop.f32.mrb[0].mxu0
    %1239 = vmatprep.mubr.f32.mxu0 0.0
    %1240 = vmatmul.mubr.f32.gmra.mrb[0].mxu0 %v1168
    %v1241 = vpop.f32.mrb[0].mxu0
    %v1242 = vadd.f32 0.0, %v1241
    %v1243 = vpop.f32.mrb[0].mxu0
    %1244 = vdwg.mxu0
    %v1246 = vsel %vm329, %v987, 0
    %v1249 = vsel %vm329, %v992, 0
    %1251 = vmatprep.subr.mxu0 0.0
    %1252 = vmatpush1.msra.mxu0 %v1081
    %1253 = vmatprep.subr.mxu0 0.0
    %1254 = vmatpush1.msra.mxu0 0.0
    %1255 = vmatprep.subr.mxu0 0.0
    %1256 = vmatpush1.msra.mxu0 0.0
    %1257 = vmatprep.subr.mxu0 0.0
    %1258 = vmatpush1.msra.mxu0 0.0
    %1259 = vmatprep.subr.mxu0 0.0
    %1260 = vmatpush1.msra.mxu0 0.0
    %1261 = vmatprep.subr.mxu0 0.0
    %1262 = vmatpush1.msra.mxu0 0.0
    %1263 = vmatprep.subr.mxu0 0.0
    %1264 = vmatpush1.msra.mxu0 0.0
    %1265 = vmatprep.subr.mxu0 0.0
    %1266 = vmatpush1.msra.mxu0 0.0
    %1267 = vmatprep.subr.mxu0 0.0
    %1268 = vmatpush1.msra.mxu0 0.0
    %1269 = vmatprep.subr.mxu0 0.0
    %1270 = vmatpush1.msra.mxu0 0.0
    %1271 = vmatprep.subr.mxu0 0.0
    %1272 = vmatpush1.msra.mxu0 0.0
    %1273 = vmatprep.subr.mxu0 0.0
    %1274 = vmatpush1.msra.mxu0 0.0
    %1275 = vmatprep.subr.mxu0 0.0
    %1276 = vmatpush1.msra.mxu0 0.0
    %1277 = vmatprep.subr.mxu0 0.0
    %1278 = vmatpush1.msra.mxu0 0.0
    %1279 = vmatprep.subr.mxu0 0.0
    %1280 = vmatpush1.msra.mxu0 0.0
    %1281 = vmatprep.subr.mxu0 0.0
    %1282 = vmatpush1.msra.mxu0 0.0
    %1283 = vmatprep.subr.mxu0 0.0
    %1284 = vmatpush1.msra.mxu0 0.0
    %1285 = vmatprep.subr.mxu0 0.0
    %1286 = vmatpush1.msra.mxu0 0.0
    %1287 = vmatprep.subr.mxu0 0.0
    %1288 = vmatpush1.msra.mxu0 0.0
    %1289 = vmatprep.subr.mxu0 0.0
    %1290 = vmatpush1.msra.mxu0 0.0
    %1291 = vmatprep.subr.mxu0 0.0
    %1292 = vmatpush1.msra.mxu0 0.0
    %1293 = vmatprep.subr.mxu0 0.0
    %1294 = vmatpush1.msra.mxu0 0.0
    %1295 = vmatprep.subr.mxu0 0.0
    %1296 = vmatpush1.msra.mxu0 0.0
    %1297 = vmatprep.subr.mxu0 0.0
    %1298 = vmatpush1.msra.mxu0 0.0
    %1299 = vmatprep.subr.mxu0 0.0
    %1300 = vmatpush1.msra.mxu0 0.0
    %1301 = vmatprep.subr.mxu0 0.0
    %1302 = vmatpush1.msra.mxu0 0.0
    %1303 = vmatprep.subr.mxu0 0.0
    %1304 = vmatpush1.msra.mxu0 0.0
    %1305 = vmatprep.subr.mxu0 0.0
    %1306 = vmatpush1.msra.mxu0 0.0
    %1307 = vmatprep.subr.mxu0 0.0
    %1308 = vmatpush1.msra.mxu0 0.0
    %1309 = vmatprep.subr.mxu0 0.0
    %1310 = vmatpush1.msra.mxu0 0.0
    %1311 = vmatprep.subr.mxu0 0.0
    %1312 = vmatpush1.msra.mxu0 0.0
    %1313 = vmatprep.subr.mxu0 0.0
    %1314 = vmatpush1.msra.mxu0 0.0
    %1315 = vmatprep.mubr.f32.mxu0 0.0
    %1316 = vmatmul.mubr.f32.gmra.mrb[0].mxu0 %v1246
    %v1317 = vpop.f32.mrb[0].mxu0
    %v1318 = vadd.f32 0.0, %v1317
    %v1319 = vpop.f32.mrb[0].mxu0
    %1320 = vmatprep.mubr.f32.mxu0 0.0
    %1321 = vmatmul.mubr.f32.gmra.mrb[0].mxu0 %v1249
    %v1322 = vpop.f32.mrb[0].mxu0
    %v1323 = vadd.f32 0.0, %v1322
    %v1324 = vpop.f32.mrb[0].mxu0
    %1325 = vdwg.mxu0
    %v1327 = vsel %vm329, %v1071, 0
    %v1330 = vsel %vm329, %v1076, 0
    %1332 = vmatprep.subr.mxu0 0.0
    %1333 = vmatpush1.msra.mxu0 %v1082
    %1334 = vmatprep.subr.mxu0 0.0
    %1335 = vmatpush1.msra.mxu0 0.0
    %1336 = vmatprep.subr.mxu0 0.0
    %1337 = vmatpush1.msra.mxu0 0.0
    %1338 = vmatprep.subr.mxu0 0.0
    %1339 = vmatpush1.msra.mxu0 0.0
    %1340 = vmatprep.subr.mxu0 0.0
    %1341 = vmatpush1.msra.mxu0 0.0
    %1342 = vmatprep.subr.mxu0 0.0
    %1343 = vmatpush1.msra.mxu0 0.0
    %1344 = vmatprep.subr.mxu0 0.0
    %1345 = vmatpush1.msra.mxu0 0.0
    %1346 = vmatprep.subr.mxu0 0.0
    %1347 = vmatpush1.msra.mxu0 0.0
    %1348 = vmatprep.subr.mxu0 0.0
    %1349 = vmatpush1.msra.mxu0 0.0
    %1350 = vmatprep.subr.mxu0 0.0
    %1351 = vmatpush1.msra.mxu0 0.0
    %1352 = vmatprep.subr.mxu0 0.0
    %1353 = vmatpush1.msra.mxu0 0.0
    %1354 = vmatprep.subr.mxu0 0.0
    %1355 = vmatpush1.msra.mxu0 0.0
    %1356 = vmatprep.subr.mxu0 0.0
    %1357 = vmatpush1.msra.mxu0 0.0
    %1358 = vmatprep.subr.mxu0 0.0
    %1359 = vmatpush1.msra.mxu0 0.0
    %1360 = vmatprep.subr.mxu0 0.0
    %1361 = vmatpush1.msra.mxu0 0.0
    %1362 = vmatprep.subr.mxu0 0.0
    %1363 = vmatpush1.msra.mxu0 0.0
    %1364 = vmatprep.subr.mxu0 0.0
    %1365 = vmatpush1.msra.mxu0 0.0
    %1366 = vmatprep.subr.mxu0 0.0
    %1367 = vmatpush1.msra.mxu0 0.0
    %1368 = vmatprep.subr.mxu0 0.0
    %1369 = vmatpush1.msra.mxu0 0.0
    %1370 = vmatprep.subr.mxu0 0.0
    %1371 = vmatpush1.msra.mxu0 0.0
    %1372 = vmatprep.subr.mxu0 0.0
    %1373 = vmatpush1.msra.mxu0 0.0
    %1374 = vmatprep.subr.mxu0 0.0
    %1375 = vmatpush1.msra.mxu0 0.0
    %1376 = vmatprep.subr.mxu0 0.0
    %1377 = vmatpush1.msra.mxu0 0.0
    %1378 = vmatprep.subr.mxu0 0.0
    %1379 = vmatpush1.msra.mxu0 0.0
    %1380 = vmatprep.subr.mxu0 0.0
    %1381 = vmatpush1.msra.mxu0 0.0
    %1382 = vmatprep.subr.mxu0 0.0
    %1383 = vmatpush1.msra.mxu0 0.0
    %1384 = vmatprep.subr.mxu0 0.0
    %1385 = vmatpush1.msra.mxu0 0.0
    %1386 = vmatprep.subr.mxu0 0.0
    %1387 = vmatpush1.msra.mxu0 0.0
    %1388 = vmatprep.subr.mxu0 0.0
    %1389 = vmatpush1.msra.mxu0 0.0
    %1390 = vmatprep.subr.mxu0 0.0
    %1391 = vmatpush1.msra.mxu0 0.0
    %1392 = vmatprep.subr.mxu0 0.0
    %1393 = vmatpush1.msra.mxu0 0.0
    %1394 = vmatprep.subr.mxu0 0.0
    %1395 = vmatpush1.msra.mxu0 0.0
    %1396 = vmatprep.mubr.f32.mxu0 0.0
    %1397 = vmatmul.mubr.f32.gmra.mrb[0].mxu0 %v1327
    %v1398 = vpop.f32.mrb[0].mxu0
    %v1399 = vadd.f32 0.0, %v1398
    %v1400 = vpop.f32.mrb[0].mxu0
    %1401 = vmatprep.mubr.f32.mxu0 0.0
    %1402 = vmatmul.mubr.f32.gmra.mrb[0].mxu0 %v1330
    %v1403 = vpop.f32.mrb[0].mxu0
    %v1404 = vadd.f32 0.0, %v1403
    %v1405 = vpop.f32.mrb[0].mxu0
    %1406 = vdwg.mxu0
    %v1407 = vadd.f32 %v1156, %v1237
    %v1408 = vadd.f32 %v1407, %v1318
    %v1409 = vadd.f32 %v1408, %v1399
    %v1410 = vadd.f32 %v1161, %v1242
    %v1411 = vadd.f32 %v1410, %v1323
    %v1412 = vadd.f32 %v1411, %v1404
    %1413 = vst [vmem:[#allocation10] sm:$0xff] %v1409
    %1414 = vst [vmem:[#allocation10 + $0x8] sm:$0xff] %v1412
    // Predicated region
    $region34: #{tpu_custom_call.1} parent=1 // pred_check
      _
    $region35: #{tpu_custom_call.1} parent=1 // pred_check_branch
      %1416 = sbr.rel (0) target = $region37
    $region36: #{tpu_custom_call.1} parent=1 // pred_region
      %s1418 = ssub.s32 256, 256
      %1419 = vsyncadd [#allocation4], %s1418
      %s1420 = sshll.u32 [#allocation10], 4
      %s1421 = int_to_ptr.vmem [resolvable:$true] %s1420
      %1426 = dma.vmem_to_hbm [thread:$0]  %s1421, 256, %s4, [#allocation4], 128, 128, 8
    $region37: #{tpu_custom_call.1} parent=1 // pred_fallthru
      _
    // Predicated region
    $region38: #{tpu_custom_call.1} parent=1 // pred_check
      _
    $region39: #{tpu_custom_call.1} parent=1 // pred_check_branch
      %1428 = sbr.rel (0) target = $region41
    $region40: #{tpu_custom_call.1} parent=1 // pred_region
      %1429 = dma.done [#allocation4], 256
    $region41: #{tpu_custom_call.1} parent=1 // pred_fallthru
      _
    %1430 = vsyncpa [#allocation3], 1
    %1431 = vsyncpa [#allocation6], 1
    %1432 = vsyncpa [#allocation9], 1
    %1433 = vsyncpa [#allocation4], 1

</llo_original>
